<compile_context>
chip_gen: v6e
topology: v6e:2x2x1
jax: 0.10.0
libtpu: 0.0.40
codegen_flags: <defaults>
</compile_context>

<pallas_src>
import jax
import jax.numpy as jnp
from jax.experimental import pallas as pl
from jax.experimental.pallas import tpu as pltpu


# ----------------------------------------------------------------------------
# Kernel: 3 matmuls, 2 tanh regions, one dense 128-lane store.
# ----------------------------------------------------------------------------
def shared_net_kernel(x_ref,
                      w1_ref, b1_ref,
                      w2_ref, b2_ref,
                      w3_ref, b3_ref,
                      out_ref):
    """One batch tile of the fused forward (actor + critic).

    x_ref:   (TB, 3*fd3)            all three player chunks, lane-contiguous
    w1/b1:   (3*fd3, 768), (1, 768) fused policy+value layer 1 (block-diag)
    w2/b2:   (768, 288),   (1, 288) fused policy+value layer 2 (block-diag)
    w3/b3:   (288, 128),   (1, 128) fused policy head + value fuse, zero-padded
    out_ref: (TB, 128)              lanes [0,3*pi3)=actions, lane 3*pi3=value
    """
    x = x_ref[...]

    # Layer 1 (both branches): bf16 (or f32) operands, f32 MXU accumulate,
    # f32 bias add + tanh.
    h1 = jnp.tanh(
        jnp.dot(x, w1_ref[...], preferred_element_type=jnp.float32)
        + b1_ref[...])

    # Layer 2 (both branches).
    h1 = h1.astype(w2_ref.dtype)
    h2 = jnp.tanh(
        jnp.dot(h1, w2_ref[...], preferred_element_type=jnp.float32)
        + b2_ref[...])

    # Head: policy layer 3 and value-fuse fused into one padded 128-lane matmul
    # -> single unmasked lane-dense store.
    h2 = h2.astype(w3_ref.dtype)
    out = (jnp.dot(h2, w3_ref[...], preferred_element_type=jnp.float32)
           + b3_ref[...])
    out_ref[...] = out.astype(out_ref.dtype)


# ----------------------------------------------------------------------------
# Wrapper
# ----------------------------------------------------------------------------
def _round_up(x, m):
    return ((x + m - 1) // m) * m


def _block_diag3(w):
    """Embed a shared (k, n) weight as a (3k, 3n) block-diagonal matrix."""
    k, n = w.shape
    z = jnp.zeros((k, n), w.dtype)
    return jnp.concatenate([
        jnp.concatenate([w, z, z], axis=1),
        jnp.concatenate([z, w, z], axis=1),
        jnp.concatenate([z, z, w], axis=1),
    ], axis=0)


def pack_params(params, compute_dtype=jnp.bfloat16):
    """Re-parameterize the shared per-player MLPs as 3 fused block-diag layers."""
    bd = _block_diag3
    t3 = lambda b: jnp.tile(b, (1, 3))

    pi3 = params["pw3"].shape[1]
    n_pol2 = 3 * params["pw2"].shape[1]          # 3 * 64  = 192
    n_val2 = 3 * params["vw2"].shape[1]          # 3 * 32  = 96
    head_in = n_pol2 + n_val2                    # 288
    head_out = 3 * pi3 + 1                       # actions + value (13)
    head_pad = _round_up(max(head_out, 128), 128)  # lane-dense output width

    # Layer 1 (policy || value), block-diag over players: (3*fd3, 768).
    w1 = jnp.concatenate([bd(params["pw1"]), bd(params["vw1"])], axis=1)
    b1 = jnp.concatenate([t3(params["pb1"]), t3(params["vb1"])], axis=1)

    # Layer 2 (policy || value): blockdiag(pw2_bd, vw2_bd) -> (768, 288).
    pw2b, vw2b = bd(params["pw2"]), bd(params["vw2"])
    w2 = jnp.block([
        [pw2b, jnp.zeros((pw2b.shape[0], n_val2), pw2b.dtype)],
        [jnp.zeros((vw2b.shape[0], n_pol2), vw2b.dtype), vw2b],
    ])
    b2 = jnp.concatenate([t3(params["pb2"]), t3(params["vb2"])], axis=1)

    # Head: blockdiag(pw3_bd, fw) zero-padded to `head_pad` output lanes.
    pw3b = bd(params["pw3"])                     # (192, 3*pi3)
    w3 = jnp.zeros((head_in, head_pad), jnp.float32)
    w3 = w3.at[:n_pol2, :3 * pi3].set(pw3b)
    w3 = w3.at[n_pol2:, 3 * pi3:3 * pi3 + 1].set(params["fw"])
    b3 = jnp.zeros((1, head_pad), jnp.float32)
    b3 = b3.at[:, :3 * pi3].set(t3(params["pb3"]))
    b3 = b3.at[:, 3 * pi3:3 * pi3 + 1].set(params["fb"])

    # MXU operands in compute_dtype (bf16 on all three generations);
    # biases stay f32 so bias-add / tanh run on the universal f32 VPU/EUP path.
    cast = lambda w: w.astype(compute_dtype)
    return (cast(w1), b1.astype(jnp.float32),
            cast(w2), b2.astype(jnp.float32),
            cast(w3), b3.astype(jnp.float32))


def shared_network_both(features, params, *, block_b=1024,
                        compute_dtype=jnp.bfloat16):
    """Runs the fused forward_actor / forward_critic Pallas kernel."""
    B, feature_dim = features.shape
    pi3 = params["pw3"].shape[1]
    last_layer_dim_pi = 3 * pi3

    packed = pack_params(params, compute_dtype)
    head_pad = packed[4].shape[1]                # padded head width (>= 128)

    # Batch tile: multiple of 8 sublanes, capped so the grid has >= 2 steps
    # ("parallel" then shards them across v7x's two TensorCores); production
    # sweet spot is 512-2048 rows per step (block_b default 1024).
    tb = min(block_b, _round_up(pl.cdiv(B, 2), 8))
    tb = max(tb, 8)
    b_pad = _round_up(B, tb)
    x = features.astype(compute_dtype)
    if b_pad != B:
        x = jnp.pad(x, ((0, b_pad - B), (0, 0)))
    grid = (b_pad // tb,)

    def const_spec(arr):
        # Whole weight resident in VMEM; constant block index -> fetched once
        # and reused across grid steps.
        return pl.BlockSpec(arr.shape, lambda i: (0, 0))

    in_specs = ([pl.BlockSpec((tb, feature_dim), lambda i: (i, 0))]
                + [const_spec(w) for w in packed])
    out_specs = pl.BlockSpec((tb, head_pad), lambda i: (i, 0))
    out_shape = jax.ShapeDtypeStruct((b_pad, head_pad), jnp.float32)

    out = pl.pallas_call(
        shared_net_kernel,
        grid=grid,
        in_specs=in_specs,
        out_specs=out_specs,
        out_shape=out_shape,
        compiler_params=pltpu.CompilerParams(
            dimension_semantics=("parallel",)),
    )(x, *packed)

    # Actions live in lanes [0, 3*pi3); the critic value in lane 3*pi3.
    actions = out[:B, :last_layer_dim_pi]
    value = out[:B, last_layer_dim_pi:last_layer_dim_pi + 1]
    return actions, value


# ----------------------------------------------------------------------------
# Parameters & pure-JAX reference (mirrors the PyTorch module exactly)
# ----------------------------------------------------------------------------
def init_params(key, feature_dim, last_layer_dim_pi):
    """Deterministic synthetic parameters (shapes follow the torch module)."""
    fd3 = feature_dim // 3
    pi3 = last_layer_dim_pi // 3
    ks = jax.random.split(key, 12)

    def lin(kw, kb, fan_in, fan_out):
        bound = 1.0 / jnp.sqrt(fan_in)
        w = jax.random.uniform(kw, (fan_in, fan_out), jnp.float32, -bound, bound)
        b = jax.random.uniform(kb, (1, fan_out), jnp.float32, -bound, bound)
        return w, b

    pw1, pb1 = lin(ks[0], ks[1], fd3, 128)
    pw2, pb2 = lin(ks[2], ks[3], 128, 64)
    pw3, pb3 = lin(ks[4], ks[5], 64, pi3)
    vw1, vb1 = lin(ks[6], ks[7], fd3, 128)
    vw2, vb2 = lin(ks[8], ks[9], 128, 32)
    fw, fb = lin(ks[10], ks[11], 32 * 3, 1)

    return dict(pw1=pw1, pb1=pb1, pw2=pw2, pb2=pb2, pw3=pw3, pb3=pb3,
                vw1=vw1, vb1=vb1, vw2=vw2, vb2=vb2, fw=fw, fb=fb)


def reference_forward(features, params):
    """Pure-JAX reference mirroring the PyTorch forward exactly."""
    fd3 = features.shape[-1] // 3

    def policy(x):
        h = jnp.tanh(x @ params["pw1"] + params["pb1"])
        h = jnp.tanh(h @ params["pw2"] + params["pb2"])
        return h @ params["pw3"] + params["pb3"]

    def value(x):
        h = jnp.tanh(x @ params["vw1"] + params["vb1"])
        return jnp.tanh(h @ params["vw2"] + params["vb2"])

    chunks = [features[:, p * fd3:(p + 1) * fd3] for p in range(3)]
    actions = jnp.concatenate([policy(c) for c in chunks], axis=-1)
    vcat = jnp.concatenate([value(c) for c in chunks], axis=-1)
    val = vcat @ params["fw"] + params["fb"]
    return actions, val


if __name__ == "__main__":
    feature_dim = 48          # fd3 = 16 per player
    last_layer_dim_pi = 12    # pi3 = 4  per player
    batch = 64

    key = jax.random.PRNGKey(0)
    k_feat, k_params = jax.random.split(key)
    features = jax.random.normal(k_feat, (batch, feature_dim), jnp.float32)
    params = init_params(k_params, feature_dim, last_layer_dim_pi)

    ref_actions, ref_value = reference_forward(features, params)

    # Production path: bf16 MXU operands, f32 accumulate.  With batch=64 the
    # tile cap gives a 2-step grid (32 rows/step), exercising the pipeline and
    # the v7x dual-TensorCore sharding.
    actions, value = shared_network_both(features, params)
    actions = jax.block_until_ready(actions)
    value = jax.block_until_ready(value)
    assert actions.shape == (batch, last_layer_dim_pi)
    assert value.shape == (batch, 1)
    assert jnp.allclose(actions, ref_actions, atol=5e-2, rtol=5e-2)   # bf16 tol
    assert jnp.allclose(value, ref_value, atol=5e-2, rtol=5e-2)

    # Parity mode: exact f32 re-parameterization check against the reference.
    actions32, value32 = shared_network_both(features, params,
                                             compute_dtype=jnp.float32)
    actions32 = jax.block_until_ready(actions32)
    value32 = jax.block_until_ready(value32)
    assert jnp.allclose(actions32, ref_actions, atol=1e-4, rtol=1e-4)
    assert jnp.allclose(value32, ref_value, atol=1e-4, rtol=1e-4)

    print("KERNEL_OK")
</pallas_src>

<mosaic_0001>
module attributes {stable_mosaic.version = 11 : i64} {
  func.func @shared_net_kernel(%arg0: i32, %arg1: memref<32x48xbf16, #tpu.memory_space<vmem>>, %arg2: memref<48x768xbf16, #tpu.memory_space<vmem>>, %arg3: memref<1x768xf32, #tpu.memory_space<vmem>>, %arg4: memref<768x288xbf16, #tpu.memory_space<vmem>>, %arg5: memref<1x288xf32, #tpu.memory_space<vmem>>, %arg6: memref<288x128xbf16, #tpu.memory_space<vmem>>, %arg7: memref<1x128xf32, #tpu.memory_space<vmem>>, %arg8: memref<32x128xf32, #tpu.memory_space<vmem>>) attributes {dimension_semantics = [#tpu.dimension_semantics<parallel>], iteration_bounds = array<i64: 2>, scalar_prefetch = 0 : i64, scratch_operands = 0 : i64, tpu.core_type = #tpu.core_type<tc>, window_params = [{transform_indices = @transform_0, window_bounds = array<i64: 32, 48>}, {pipeline_mode = #tpu.pipeline_mode<synchronous>, transform_indices = @transform_1, window_bounds = array<i64: 48, 768>}, {pipeline_mode = #tpu.pipeline_mode<synchronous>, transform_indices = @transform_2, window_bounds = array<i64: 1, 768>}, {pipeline_mode = #tpu.pipeline_mode<synchronous>, transform_indices = @transform_3, window_bounds = array<i64: 768, 288>}, {pipeline_mode = #tpu.pipeline_mode<synchronous>, transform_indices = @transform_4, window_bounds = array<i64: 1, 288>}, {pipeline_mode = #tpu.pipeline_mode<synchronous>, transform_indices = @transform_5, window_bounds = array<i64: 288, 128>}, {pipeline_mode = #tpu.pipeline_mode<synchronous>, transform_indices = @transform_6, window_bounds = array<i64: 1, 128>}, {transform_indices = @transform_7, window_bounds = array<i64: 32, 128>}]} {
    %c0 = arith.constant 0 : index
    %c0_0 = arith.constant 0 : index
    %0 = vector.load %arg1[%c0, %c0_0] : memref<32x48xbf16, #tpu.memory_space<vmem>>, vector<32x48xbf16>
    %c0_1 = arith.constant 0 : index
    %c0_2 = arith.constant 0 : index
    %1 = vector.load %arg2[%c0_1, %c0_2] : memref<48x768xbf16, #tpu.memory_space<vmem>>, vector<48x768xbf16>
    %cst = arith.constant dense<0.000000e+00> : vector<32x768xf32>
    %2 = tpu.matmul %0, %1, %cst {dimension_numbers = #tpu.dot_dimension_numbers<[1], [0], [0], [1], [0, 0, 1, 1], [], []>} : vector<32x48xbf16>, vector<48x768xbf16>, vector<32x768xf32> -> vector<32x768xf32>
    %c0_3 = arith.constant 0 : index
    %c0_4 = arith.constant 0 : index
    %3 = vector.load %arg3[%c0_3, %c0_4] : memref<1x768xf32, #tpu.memory_space<vmem>>, vector<1x768xf32>
    %4 = vector.broadcast %3 : vector<1x768xf32> to vector<32x768xf32>
    %5 = arith.addf %2, %4 : vector<32x768xf32>
    %6 = math.tanh %5 : vector<32x768xf32>
    %7 = arith.truncf %6 : vector<32x768xf32> to vector<32x768xbf16>
    %c0_5 = arith.constant 0 : index
    %c0_6 = arith.constant 0 : index
    %8 = vector.load %arg4[%c0_5, %c0_6] : memref<768x288xbf16, #tpu.memory_space<vmem>>, vector<768x288xbf16>
    %cst_7 = arith.constant dense<0.000000e+00> : vector<32x288xf32>
    %9 = tpu.matmul %7, %8, %cst_7 {dimension_numbers = #tpu.dot_dimension_numbers<[1], [0], [0], [1], [0, 0, 1, 1], [], []>} : vector<32x768xbf16>, vector<768x288xbf16>, vector<32x288xf32> -> vector<32x288xf32>
    %c0_8 = arith.constant 0 : index
    %c0_9 = arith.constant 0 : index
    %10 = vector.load %arg5[%c0_8, %c0_9] : memref<1x288xf32, #tpu.memory_space<vmem>>, vector<1x288xf32>
    %11 = vector.broadcast %10 : vector<1x288xf32> to vector<32x288xf32>
    %12 = arith.addf %9, %11 : vector<32x288xf32>
    %13 = math.tanh %12 : vector<32x288xf32>
    %14 = arith.truncf %13 : vector<32x288xf32> to vector<32x288xbf16>
    %c0_10 = arith.constant 0 : index
    %c0_11 = arith.constant 0 : index
    %15 = vector.load %arg6[%c0_10, %c0_11] : memref<288x128xbf16, #tpu.memory_space<vmem>>, vector<288x128xbf16>
    %cst_12 = arith.constant dense<0.000000e+00> : vector<32x128xf32>
    %16 = tpu.matmul %14, %15, %cst_12 {dimension_numbers = #tpu.dot_dimension_numbers<[1], [0], [0], [1], [0, 0, 1, 1], [], []>} : vector<32x288xbf16>, vector<288x128xbf16>, vector<32x128xf32> -> vector<32x128xf32>
    %c0_13 = arith.constant 0 : index
    %c0_14 = arith.constant 0 : index
    %17 = vector.load %arg7[%c0_13, %c0_14] : memref<1x128xf32, #tpu.memory_space<vmem>>, vector<1x128xf32>
    %18 = vector.broadcast %17 : vector<1x128xf32> to vector<32x128xf32>
    %19 = arith.addf %16, %18 : vector<32x128xf32>
    %c0_15 = arith.constant 0 : index
    %c0_16 = arith.constant 0 : index
    %20 = vector.load %arg8[%c0_15, %c0_16] : memref<32x128xf32, #tpu.memory_space<vmem>>, vector<32x128xf32>
    tpu.vector_store %arg8[%c0_15, %c0_16], %19 {strides = array<i32>} : memref<32x128xf32, #tpu.memory_space<vmem>>, vector<32x128xf32>,
    return
  }
  func.func @transform_0(%arg0: i32) -> (i32, i32) {
    %c0_i32 = arith.constant 0 : i32
    %c0_i32_0 = arith.constant 0 : i32
    return %arg0, %c0_i32 : i32, i32
  }
  func.func @transform_1(%arg0: i32) -> (i32, i32) {
    %c0_i32 = arith.constant 0 : i32
    %c0_i32_0 = arith.constant 0 : i32
    %c0_i32_1 = arith.constant 0 : i32
    return %c0_i32, %c0_i32_0 : i32, i32
  }
  func.func @transform_2(%arg0: i32) -> (i32, i32) {
    %c0_i32 = arith.constant 0 : i32
    %c0_i32_0 = arith.constant 0 : i32
    %c0_i32_1 = arith.constant 0 : i32
    return %c0_i32, %c0_i32_0 : i32, i32
  }
  func.func @transform_3(%arg0: i32) -> (i32, i32) {
    %c0_i32 = arith.constant 0 : i32
    %c0_i32_0 = arith.constant 0 : i32
    %c0_i32_1 = arith.constant 0 : i32
    return %c0_i32, %c0_i32_0 : i32, i32
  }
  func.func @transform_4(%arg0: i32) -> (i32, i32) {
    %c0_i32 = arith.constant 0 : i32
    %c0_i32_0 = arith.constant 0 : i32
    %c0_i32_1 = arith.constant 0 : i32
    return %c0_i32, %c0_i32_0 : i32, i32
  }
  func.func @transform_5(%arg0: i32) -> (i32, i32) {
    %c0_i32 = arith.constant 0 : i32
    %c0_i32_0 = arith.constant 0 : i32
    %c0_i32_1 = arith.constant 0 : i32
    return %c0_i32, %c0_i32_0 : i32, i32
  }
  func.func @transform_6(%arg0: i32) -> (i32, i32) {
    %c0_i32 = arith.constant 0 : i32
    %c0_i32_0 = arith.constant 0 : i32
    %c0_i32_1 = arith.constant 0 : i32
    return %c0_i32, %c0_i32_0 : i32, i32
  }
  func.func @transform_7(%arg0: i32) -> (i32, i32) {
    %c0_i32 = arith.constant 0 : i32
    %c0_i32_0 = arith.constant 0 : i32
    return %arg0, %c0_i32 : i32, i32
  }
}

</mosaic_0001>

<llo_original>
// kernel: tpu_custom_call.1
$region0: #{tpu_custom_call.1}
  #allocation0 [shape = 'u32[]', space=smem, size = 0x4, offset = 0x4, fixed_abs, tag = 'smem constant byte address 0x4 - core index']
  #allocation1 [shape = 'u32[144,128]{1,0:T(1,128)}', space=vmem, size = 0x12000, scoped, tag = 'internal scratch']
  %s0 = inlined_call_operand.vmem [shape: bf16[64,48], index: 0, kind: input, shape index: {}]
  %s1 = inlined_call_operand.vmem [shape: bf16[48,768], index: 1, kind: input, shape index: {}]
  %s2 = inlined_call_operand.vmem [shape: f32[1,768], index: 2, kind: input, shape index: {}]
  %s3 = inlined_call_operand.vmem [shape: bf16[768,288], index: 3, kind: input, shape index: {}]
  %s4 = inlined_call_operand.vmem [shape: f32[1,288], index: 4, kind: input, shape index: {}]
  %s5 = inlined_call_operand.vmem [shape: bf16[288,128], index: 5, kind: input, shape index: {}]
  %s6 = inlined_call_operand.vmem [shape: f32[1,128], index: 6, kind: input, shape index: {}]
  %s7 = inlined_call_operand.hbm [shape: f32[64,128], index: 7, kind: output, shape index: {}]
  %s8 = sld [smem:[#allocation0]]
  $region61: #{tpu_custom_call.1} parent=0
    _
  %s10 = ssub.s32 1, %s8
  %s11 = scalar_select 0, %s10, %s8
  $region1: #{tpu_custom_call.1} parent=0
    #allocation2 [shape = 'u8[32768]{0}', space=vmem, size = 0x8000, scoped, tag = 'output window, operand 0']
    #allocation3 [shape = 's32[2]{0}', space=sflag, size = 0x8, scoped, tag = 'scoped memory for tpu_custom_call.1']
    %12 = vsyncpa [#allocation3], 0
    %s13 = scalar_lea.sflag [#allocation3], 1
    %14 = vsyncpa %s13, 0
    loop: start=0, step=1, limit=4
    $region2: #{tpu_custom_call.1} parent=1 // loop_pre_header
      _
    $region3: #{tpu_custom_call.1} parent=1 // loop_header
      %s16 = sphi 0, %s20
      %p17 = scmp.ge.s32.totalorder %s16, 4
      %s26 = sphi 0, %s28
      %s29 = sphi 0, %s26
      %s30 = sphi 0, %s29
      %s46 = sphi 0, %s30
      %s50 = sphi 0, %s50
      %s52 = sphi 0, %s50
      %s53 = sphi 0, %s52
      %s67 = sphi 0, %s53
      %s71 = sphi 0, %s71
      %s73 = sphi 0, %s71
      %s74 = sphi 0, %s73
      %s88 = sphi 0, %s74
      %s92 = sphi 0, %s92
      %s94 = sphi 0, %s92
      %s95 = sphi 0, %s94
      %s109 = sphi 0, %s95
      %s113 = sphi 0, %s113
      %s115 = sphi 0, %s113
      %s116 = sphi 0, %s115
      %s130 = sphi 0, %s116
      %s134 = sphi 0, %s134
      %s136 = sphi 0, %s134
      %s137 = sphi 0, %s136
      %s151 = sphi 0, %s137
      %s155 = sphi 0, %s155
      %s157 = sphi 0, %s155
      %s158 = sphi 0, %s157
      %s172 = sphi 0, %s158
      %s178 = sphi 0, %s180
      %s181 = sphi 0, %s178
      %s182 = sphi 0, %s181
      %s198 = sphi 0, %s182
    $region4: #{tpu_custom_call.1} parent=1 // loop_header_branch
      %19 = sbr.rel (%p17) target = $region8
    $region5: #{tpu_custom_call.1} parent=1 // loop_body
      %s21 = ssub.s32 %s16, 1
      %s22 = ssub.s32 %s16, 2
      %s23 = sadd.s32 %s16, 1
      %s24 = ssub.s32 %s16, %s23
      %p25 = scmp.eq.s32.totalorder %s24, 0
      %s27 = sadd.s32 %s26, 1
      %s28 = scalar_select %p25, %s26, %s27
      %p31 = pneg %p25
      %p32 = scmp.eq.s32.totalorder %s16, 1
      %p33 = por %p31, %p32
      %p34 = scmp.ne.s32.totalorder %s26, %s29
      %p35 = scmp.eq.s32.totalorder %s16, 0
      %p36 = por %p34, %p35
      %p37 = scmp.ne.s32.totalorder %s26, %s29
      %p38 = scmp.eq.s32.totalorder %s21, 1
      %p39 = por %p37, %p38
      %p40 = scmp.ne.s32.totalorder %s29, %s30
      %p41 = scmp.eq.s32.totalorder %s21, 0
      %p42 = por %p40, %p41
      %p43 = scmp.ne.s32.totalorder %s29, %s30
      %p44 = scmp.eq.s32.totalorder %s22, 1
      %p45 = por %p43, %p44
      %p47 = scmp.ne.s32.totalorder %s30, %s46
      %p48 = scmp.eq.s32.totalorder %s22, 0
      %p49 = por %p47, %p48
      %s51 = sadd.s32 %s50, 1
      %p54 = scmp.eq.s32.totalorder %s16, 1
      %p55 = scmp.ne.s32.totalorder %s50, %s52
      %p56 = scmp.eq.s32.totalorder %s16, 0
      %p57 = por %p55, %p56
      %p58 = scmp.ne.s32.totalorder %s50, %s52
      %p59 = scmp.eq.s32.totalorder %s21, 1
      %p60 = por %p58, %p59
      %p61 = scmp.ne.s32.totalorder %s52, %s53
      %p62 = scmp.eq.s32.totalorder %s21, 0
      %p63 = por %p61, %p62
      %p64 = scmp.ne.s32.totalorder %s52, %s53
      %p65 = scmp.eq.s32.totalorder %s22, 1
      %p66 = por %p64, %p65
      %p68 = scmp.ne.s32.totalorder %s53, %s67
      %p69 = scmp.eq.s32.totalorder %s22, 0
      %p70 = por %p68, %p69
      %s72 = sadd.s32 %s71, 1
      %p75 = scmp.eq.s32.totalorder %s16, 1
      %p76 = scmp.ne.s32.totalorder %s71, %s73
      %p77 = scmp.eq.s32.totalorder %s16, 0
      %p78 = por %p76, %p77
      %p79 = scmp.ne.s32.totalorder %s71, %s73
      %p80 = scmp.eq.s32.totalorder %s21, 1
      %p81 = por %p79, %p80
      %p82 = scmp.ne.s32.totalorder %s73, %s74
      %p83 = scmp.eq.s32.totalorder %s21, 0
      %p84 = por %p82, %p83
      %p85 = scmp.ne.s32.totalorder %s73, %s74
      %p86 = scmp.eq.s32.totalorder %s22, 1
      %p87 = por %p85, %p86
      %p89 = scmp.ne.s32.totalorder %s74, %s88
      %p90 = scmp.eq.s32.totalorder %s22, 0
      %p91 = por %p89, %p90
      %s93 = sadd.s32 %s92, 1
      %p96 = scmp.eq.s32.totalorder %s16, 1
      %p97 = scmp.ne.s32.totalorder %s92, %s94
      %p98 = scmp.eq.s32.totalorder %s16, 0
      %p99 = por %p97, %p98
      %p100 = scmp.ne.s32.totalorder %s92, %s94
      %p101 = scmp.eq.s32.totalorder %s21, 1
      %p102 = por %p100, %p101
      %p103 = scmp.ne.s32.totalorder %s94, %s95
      %p104 = scmp.eq.s32.totalorder %s21, 0
      %p105 = por %p103, %p104
      %p106 = scmp.ne.s32.totalorder %s94, %s95
      %p107 = scmp.eq.s32.totalorder %s22, 1
      %p108 = por %p106, %p107
      %p110 = scmp.ne.s32.totalorder %s95, %s109
      %p111 = scmp.eq.s32.totalorder %s22, 0
      %p112 = por %p110, %p111
      %s114 = sadd.s32 %s113, 1
      %p117 = scmp.eq.s32.totalorder %s16, 1
      %p118 = scmp.ne.s32.totalorder %s113, %s115
      %p119 = scmp.eq.s32.totalorder %s16, 0
      %p120 = por %p118, %p119
      %p121 = scmp.ne.s32.totalorder %s113, %s115
      %p122 = scmp.eq.s32.totalorder %s21, 1
      %p123 = por %p121, %p122
      %p124 = scmp.ne.s32.totalorder %s115, %s116
      %p125 = scmp.eq.s32.totalorder %s21, 0
      %p126 = por %p124, %p125
      %p127 = scmp.ne.s32.totalorder %s115, %s116
      %p128 = scmp.eq.s32.totalorder %s22, 1
      %p129 = por %p127, %p128
      %p131 = scmp.ne.s32.totalorder %s116, %s130
      %p132 = scmp.eq.s32.totalorder %s22, 0
      %p133 = por %p131, %p132
      %s135 = sadd.s32 %s134, 1
      %p138 = scmp.eq.s32.totalorder %s16, 1
      %p139 = scmp.ne.s32.totalorder %s134, %s136
      %p140 = scmp.eq.s32.totalorder %s16, 0
      %p141 = por %p139, %p140
      %p142 = scmp.ne.s32.totalorder %s134, %s136
      %p143 = scmp.eq.s32.totalorder %s21, 1
      %p144 = por %p142, %p143
      %p145 = scmp.ne.s32.totalorder %s136, %s137
      %p146 = scmp.eq.s32.totalorder %s21, 0
      %p147 = por %p145, %p146
      %p148 = scmp.ne.s32.totalorder %s136, %s137
      %p149 = scmp.eq.s32.totalorder %s22, 1
      %p150 = por %p148, %p149
      %p152 = scmp.ne.s32.totalorder %s137, %s151
      %p153 = scmp.eq.s32.totalorder %s22, 0
      %p154 = por %p152, %p153
      %s156 = sadd.s32 %s155, 1
      %p159 = scmp.eq.s32.totalorder %s16, 1
      %p160 = scmp.ne.s32.totalorder %s155, %s157
      %p161 = scmp.eq.s32.totalorder %s16, 0
      %p162 = por %p160, %p161
      %p163 = scmp.ne.s32.totalorder %s155, %s157
      %p164 = scmp.eq.s32.totalorder %s21, 1
      %p165 = por %p163, %p164
      %p166 = scmp.ne.s32.totalorder %s157, %s158
      %p167 = scmp.eq.s32.totalorder %s21, 0
      %p168 = por %p166, %p167
      %p169 = scmp.ne.s32.totalorder %s157, %s158
      %p170 = scmp.eq.s32.totalorder %s22, 1
      %p171 = por %p169, %p170
      %p173 = scmp.ne.s32.totalorder %s158, %s172
      %p174 = scmp.eq.s32.totalorder %s22, 0
      %p175 = por %p173, %p174
      %s176 = ssub.s32 %s16, %s23
      %p177 = scmp.eq.s32.totalorder %s176, 0
      %s179 = sadd.s32 %s178, 1
      %s180 = scalar_select %p177, %s178, %s179
      %p183 = pneg %p177
      %p184 = scmp.eq.s32.totalorder %s16, 1
      %p185 = por %p183, %p184
      %p186 = scmp.ne.s32.totalorder %s178, %s181
      %p187 = scmp.eq.s32.totalorder %s16, 0
      %p188 = por %p186, %p187
      %p189 = scmp.ne.s32.totalorder %s178, %s181
      %p190 = scmp.eq.s32.totalorder %s21, 1
      %p191 = por %p189, %p190
      %p192 = scmp.ne.s32.totalorder %s181, %s182
      %p193 = scmp.eq.s32.totalorder %s21, 0
      %p194 = por %p192, %p193
      %p195 = scmp.ne.s32.totalorder %s181, %s182
      %p196 = scmp.eq.s32.totalorder %s22, 1
      %p197 = por %p195, %p196
      %p199 = scmp.ne.s32.totalorder %s182, %s198
      %p200 = scmp.eq.s32.totalorder %s22, 0
      %p201 = por %p199, %p200
      %p202 = scmp.le.s32.totalorder 1, %s16
      %p203 = scmp.lt.s32.totalorder %s16, 3
      %p204 = pnand %p202, %p203
      %p205 = pneg %p204
      // Predicated region
      $region9: #{tpu_custom_call.1} parent=5 // pred_check
        _
      $region10: #{tpu_custom_call.1} parent=5 // pred_check_branch
        %207 = sbr.rel (%p204) target = $region12
      $region11: #{tpu_custom_call.1} parent=5 // pred_region
        %s208 = ssub.s32 %s16, 1
        // Predicated region
        $region13: #{tpu_custom_call.1} parent=11 // pred_check
          %p209 = pneg %p63
        $region14: #{tpu_custom_call.1} parent=11 // pred_check_branch
          %211 = sbr.rel (%p209) target = $region16
        $region15: #{tpu_custom_call.1} parent=11 // pred_region
          _
        $region16: #{tpu_custom_call.1} parent=11 // pred_fallthru
          _
        // Predicated region
        $region17: #{tpu_custom_call.1} parent=11 // pred_check
          %p212 = pneg %p84
        $region18: #{tpu_custom_call.1} parent=11 // pred_check_branch
          %214 = sbr.rel (%p212) target = $region20
        $region19: #{tpu_custom_call.1} parent=11 // pred_region
          _
        $region20: #{tpu_custom_call.1} parent=11 // pred_fallthru
          _
        // Predicated region
        $region21: #{tpu_custom_call.1} parent=11 // pred_check
          %p215 = pneg %p105
        $region22: #{tpu_custom_call.1} parent=11 // pred_check_branch
          %217 = sbr.rel (%p215) target = $region24
        $region23: #{tpu_custom_call.1} parent=11 // pred_region
          _
        $region24: #{tpu_custom_call.1} parent=11 // pred_fallthru
          _
        // Predicated region
        $region25: #{tpu_custom_call.1} parent=11 // pred_check
          %p218 = pneg %p126
        $region26: #{tpu_custom_call.1} parent=11 // pred_check_branch
          %220 = sbr.rel (%p218) target = $region28
        $region27: #{tpu_custom_call.1} parent=11 // pred_region
          _
        $region28: #{tpu_custom_call.1} parent=11 // pred_fallthru
          _
        // Predicated region
        $region29: #{tpu_custom_call.1} parent=11 // pred_check
          %p221 = pneg %p147
        $region30: #{tpu_custom_call.1} parent=11 // pred_check_branch
          %223 = sbr.rel (%p221) target = $region32
        $region31: #{tpu_custom_call.1} parent=11 // pred_region
          _
        $region32: #{tpu_custom_call.1} parent=11 // pred_fallthru
          _
        // Predicated region
        $region33: #{tpu_custom_call.1} parent=11 // pred_check
          %p224 = pneg %p168
        $region34: #{tpu_custom_call.1} parent=11 // pred_check_branch
          %226 = sbr.rel (%p224) target = $region36
        $region35: #{tpu_custom_call.1} parent=11 // pred_region
          _
        $region36: #{tpu_custom_call.1} parent=11 // pred_fallthru
          _
      $region12: #{tpu_custom_call.1} parent=5 // pred_fallthru
        _
      %p227 = scmp.lt.s32.totalorder %s16, 2
      // Predicated region
      $region37: #{tpu_custom_call.1} parent=5 // pred_check
        %p228 = pneg %p227
      $region38: #{tpu_custom_call.1} parent=5 // pred_check_branch
        %230 = sbr.rel (%p228) target = $region40
      $region39: #{tpu_custom_call.1} parent=5 // pred_region
        // Predicated region
        $region41: #{tpu_custom_call.1} parent=39 // pred_check
          %p231 = pneg %p36
        $region42: #{tpu_custom_call.1} parent=39 // pred_check_branch
          %233 = sbr.rel (%p231) target = $region44
        $region43: #{tpu_custom_call.1} parent=39 // pred_region
          %s234 = smul.u32 4, %s16
          %p235 = scmp.lt.s32.totalorder %s234, 7
          %s236 = scalar_select %p235, %s234, 7
          %s237 = smul.addr %s236, 4
          %s238 = scalar_lea.vmem %s0, %s237
          %s239 = smul.u32 4, %s16
        $region44: #{tpu_custom_call.1} parent=39 // pred_fallthru
          _
      $region40: #{tpu_custom_call.1} parent=5 // pred_fallthru
        _
      %p240 = scmp.le.s32.totalorder 1, %s16
      %p241 = scmp.lt.s32.totalorder %s16, 3
      %p242 = pnand %p240, %p241
      %p243 = pneg %p242
      // Predicated region
      $region45: #{tpu_custom_call.1} parent=5 // pred_check
        _
      $region46: #{tpu_custom_call.1} parent=5 // pred_check_branch
        %245 = sbr.rel (%p242) target = $region48
      $region47: #{tpu_custom_call.1} parent=5 // pred_region
        %s246 = ssub.s32 %s16, 1
        %s247 = smul.u32 4, %s21
        %p248 = scmp.lt.s32.totalorder %s247, 7
        %s249 = scalar_select %p248, %s247, 7
        %s250 = smul.addr %s249, 4
        %s251 = scalar_lea.vmem %s0, %s250
        %p252 = pneg %p42
        %p253 = pneg %p39
        %p254 = pneg %p63
        %p255 = pneg %p60
        %p256 = pneg %p84
        %p257 = pneg %p81
        %p258 = pneg %p105
        %p259 = pneg %p102
        %p260 = pneg %p126
        %p261 = pneg %p123
        %p262 = pneg %p147
        %p263 = pneg %p144
        %p264 = pneg %p168
        %p265 = pneg %p165
        %p266 = pneg %p194
        %p267 = pneg %p191
        %s268 = sand.u32 %s181, 1
        %s269 = scalar_lea.sflag [#allocation3], %s268
        %s270 = sand.u32 %s181, 1
        %s271 = smul.addr %s270, 32
        %s272 = scalar_lea.vmem [#allocation2], %s271
        %s273 = smul.u32 4, %s21
        %p274 = scmp.lt.s32.totalorder %s273, 7
        %s275 = scalar_select %p274, %s273, 7
        %s276 = smul.addr %s275, 4
        %s277 = scalar_lea.vmem %s0, %s276
        %s278 = smul.u32 4, %s21
        %s279 = smul.u32 4, %s21
        %v281 = vld [vmem:[%s277] sm:$0xf]
        %v282 = vld [vmem:[%s277 + $0x4] sm:$0xf]
        %v283 = vld [vmem:[%s277 + $0x8] sm:$0xf]
        %v284 = vld [vmem:[%s277 + $0xc] sm:$0xf]
        %v285 = vld [vmem:[%s1] sm:$0xff]
        %v286 = vld [vmem:[%s1 + $0x8] sm:$0xff]
        %v287 = vld [vmem:[%s1 + $0x10] sm:$0xff]
        %v288 = vld [vmem:[%s1 + $0x18] sm:$0xff]
        %v289 = vld [vmem:[%s1 + $0x20] sm:$0xff]
        %v290 = vld [vmem:[%s1 + $0x28] sm:$0xff]
        %v291 = vld [vmem:[%s1 + $0x30] sm:$0xff]
        %v292 = vld [vmem:[%s1 + $0x38] sm:$0xff]
        %v293 = vld [vmem:[%s1 + $0x40] sm:$0xff]
        %v294 = vld [vmem:[%s1 + $0x48] sm:$0xff]
        %v295 = vld [vmem:[%s1 + $0x50] sm:$0xff]
        %v296 = vld [vmem:[%s1 + $0x58] sm:$0xff]
        %v297 = vld [vmem:[%s1 + $0x60] sm:$0xff]
        %v298 = vld [vmem:[%s1 + $0x68] sm:$0xff]
        %v299 = vld [vmem:[%s1 + $0x70] sm:$0xff]
        %v300 = vld [vmem:[%s1 + $0x78] sm:$0xff]
        %v301 = vld [vmem:[%s1 + $0x80] sm:$0xff]
        %v302 = vld [vmem:[%s1 + $0x88] sm:$0xff]
        %v303 = vld [vmem:[%s2] sm:$0x3f]
        %v305 = vlaneseq
        %v306 = vshrl.u32 %v305, 7
        %v307 = vsub.s32 0, %v306
        %v308 = vrot.slane %v303, %v307
        %v309 = vlaneseq
        %v310 = vshrl.u32 %v309, 7
        %v311 = vsub.s32 1, %v310
        %v312 = vrot.slane %v303, %v311
        %v313 = vlaneseq
        %v314 = vshrl.u32 %v313, 7
        %v315 = vsub.s32 2, %v314
        %v316 = vrot.slane %v303, %v315
        %v317 = vlaneseq
        %v318 = vshrl.u32 %v317, 7
        %v319 = vsub.s32 3, %v318
        %v320 = vrot.slane %v303, %v319
        %v321 = vlaneseq
        %v322 = vshrl.u32 %v321, 7
        %v323 = vsub.s32 4, %v322
        %v324 = vrot.slane %v303, %v323
        %v325 = vlaneseq
        %v326 = vshrl.u32 %v325, 7
        %v327 = vsub.s32 5, %v326
        %v328 = vrot.slane %v303, %v327
        %v339 = vunpack.c.l.b16 %v281
        %v340 = vunpack.c.l.b16 %v282
        %v341 = vunpack.c.l.b16 %v283
        %v342 = vunpack.c.l.b16 %v284
        %v343 = vpack.c.b16 %v340, %v339
        %v344 = vpack.c.b16 %v342, %v341
        %v363 = vunpack.c.l.b16 %v285
        %v364 = vunpack.c.h.b16 %v285
        %v365 = vunpack.c.l.b16 %v286
        %v366 = vunpack.c.h.b16 %v286
        %v367 = vunpack.c.l.b16 %v287
        %v368 = vunpack.c.h.b16 %v287
        %v369 = vunpack.c.l.b16 %v288
        %v370 = vunpack.c.h.b16 %v288
        %v371 = vunpack.c.l.b16 %v289
        %v372 = vunpack.c.h.b16 %v289
        %v373 = vunpack.c.l.b16 %v290
        %v374 = vunpack.c.h.b16 %v290
        %v375 = vunpack.c.l.b16 %v291
        %v376 = vunpack.c.h.b16 %v291
        %v377 = vunpack.c.l.b16 %v292
        %v378 = vunpack.c.h.b16 %v292
        %v379 = vunpack.c.l.b16 %v293
        %v380 = vunpack.c.h.b16 %v293
        %v381 = vunpack.c.l.b16 %v294
        %v382 = vunpack.c.h.b16 %v294
        %v383 = vunpack.c.l.b16 %v295
        %v384 = vunpack.c.h.b16 %v295
        %v385 = vunpack.c.l.b16 %v296
        %v386 = vunpack.c.h.b16 %v296
        %v387 = vunpack.c.l.b16 %v297
        %v388 = vunpack.c.h.b16 %v297
        %v389 = vunpack.c.l.b16 %v298
        %v390 = vunpack.c.h.b16 %v298
        %v391 = vunpack.c.l.b16 %v299
        %v392 = vunpack.c.h.b16 %v299
        %v393 = vunpack.c.l.b16 %v300
        %v394 = vunpack.c.h.b16 %v300
        %v395 = vunpack.c.l.b16 %v301
        %v396 = vunpack.c.h.b16 %v301
        %v397 = vunpack.c.l.b16 %v302
        %v398 = vunpack.c.h.b16 %v302
        %v399 = vpack.c.b16 %v369, %v363
        %v400 = vpack.c.b16 %v370, %v364
        %v401 = vpack.c.b16 %v371, %v365
        %v402 = vpack.c.b16 %v372, %v366
        %v403 = vpack.c.b16 %v373, %v367
        %v404 = vpack.c.b16 %v374, %v368
        %v405 = vpack.c.b16 %v381, %v375
        %v406 = vpack.c.b16 %v382, %v376
        %v407 = vpack.c.b16 %v383, %v377
        %v408 = vpack.c.b16 %v384, %v378
        %v409 = vpack.c.b16 %v385, %v379
        %v410 = vpack.c.b16 %v386, %v380
        %v411 = vpack.c.b16 %v393, %v387
        %v412 = vpack.c.b16 %v394, %v388
        %v413 = vpack.c.b16 %v395, %v389
        %v414 = vpack.c.b16 %v396, %v390
        %v415 = vpack.c.b16 %v397, %v391
        %v416 = vpack.c.b16 %v398, %v392
        %vm435 = vcmask 392192
        %v437 = vsel %vm435, %v343, 0
        %v440 = vsel %vm435, %v344, 0
        %442 = vmatprep.subr.bf16.mxu0 0
        %443 = vmatpush1.bf16.msra.mxu0 0
        %444 = vmatprep.subr.bf16.mxu0 0
        %445 = vmatpush1.bf16.msra.mxu0 0
        %446 = vmatprep.subr.bf16.mxu0 0
        %447 = vmatpush1.bf16.msra.mxu0 0
        %448 = vmatprep.subr.bf16.mxu0 0
        %449 = vmatpush1.bf16.msra.mxu0 0
        %450 = vmatprep.subr.bf16.mxu0 0
        %451 = vmatpush1.bf16.msra.mxu0 0
        %452 = vmatprep.subr.bf16.mxu0 %v412
        %453 = vmatpush1.bf16.msra.mxu0 %v411
        %454 = vmatprep.subr.bf16.mxu0 %v406
        %455 = vmatpush1.bf16.msra.mxu0 %v405
        %456 = vmatprep.subr.bf16.mxu0 %v400
        %457 = vmatpush1.bf16.msra.mxu0 %v399
        %458 = vmatprep.subr.bf16.mxu0 0
        %459 = vmatpush2.bf16.msra.mxu0 0
        %460 = vmatprep.subr.bf16.mxu0 0
        %461 = vmatpush2.bf16.msra.mxu0 0
        %462 = vmatprep.subr.bf16.mxu0 0
        %463 = vmatpush2.bf16.msra.mxu0 0
        %464 = vmatprep.subr.bf16.mxu0 0
        %465 = vmatpush2.bf16.msra.mxu0 0
        %466 = vmatprep.subr.bf16.mxu0 0
        %467 = vmatpush2.bf16.msra.mxu0 0
        %468 = vmatprep.subr.bf16.mxu0 0
        %469 = vmatpush2.bf16.msra.mxu0 0
        %470 = vmatprep.subr.bf16.mxu0 0
        %471 = vmatpush2.bf16.msra.mxu0 0
        %472 = vmatprep.subr.bf16.mxu0 0
        %473 = vmatpush2.bf16.msra.mxu0 0
        %474 = vmatprep.mubr.bf16.mxu0 0
        %475 = vmatmul.mubr.bf16.gmra.mxu0 %v437
        %v476 = vpop.f32.mrf.mxu0
        %v477 = vadd.f32 %v308, %v476
        %v478 = vpop.f32.mrf.mxu0
        %v479 = vadd.f32 %v312, %v478
        %v480 = vpop.f32.mrf.mxu0
        %v481 = vadd.f32 %v308, %v480
        %v482 = vpop.f32.mrf.mxu0
        %v483 = vadd.f32 %v312, %v482
        %484 = vmatprep.mubr.bf16.mxu0 0
        %485 = vmatmul.mubr.bf16.gmra.mxu0 %v440
        %v486 = vpop.f32.mrf.mxu0
        %v487 = vadd.f32 %v308, %v486
        %v488 = vpop.f32.mrf.mxu0
        %v489 = vadd.f32 %v312, %v488
        %v490 = vpop.f32.mrf.mxu0
        %v491 = vadd.f32 %v308, %v490
        %v492 = vpop.f32.mrf.mxu0
        %v493 = vadd.f32 %v312, %v492
        %494 = vdwg.mxu0
        %495 = vmatprep.subr.bf16.mxu0 0
        %496 = vmatpush1.bf16.msra.mxu0 0
        %497 = vmatprep.subr.bf16.mxu0 0
        %498 = vmatpush1.bf16.msra.mxu0 0
        %499 = vmatprep.subr.bf16.mxu0 0
        %500 = vmatpush1.bf16.msra.mxu0 0
        %501 = vmatprep.subr.bf16.mxu0 0
        %502 = vmatpush1.bf16.msra.mxu0 0
        %503 = vmatprep.subr.bf16.mxu0 0
        %504 = vmatpush1.bf16.msra.mxu0 0
        %505 = vmatprep.subr.bf16.mxu0 %v414
        %506 = vmatpush1.bf16.msra.mxu0 %v413
        %507 = vmatprep.subr.bf16.mxu0 %v408
        %508 = vmatpush1.bf16.msra.mxu0 %v407
        %509 = vmatprep.subr.bf16.mxu0 %v402
        %510 = vmatpush1.bf16.msra.mxu0 %v401
        %511 = vmatprep.subr.bf16.mxu0 0
        %512 = vmatpush2.bf16.msra.mxu0 0
        %513 = vmatprep.subr.bf16.mxu0 0
        %514 = vmatpush2.bf16.msra.mxu0 0
        %515 = vmatprep.subr.bf16.mxu0 0
        %516 = vmatpush2.bf16.msra.mxu0 0
        %517 = vmatprep.subr.bf16.mxu0 0
        %518 = vmatpush2.bf16.msra.mxu0 0
        %519 = vmatprep.subr.bf16.mxu0 0
        %520 = vmatpush2.bf16.msra.mxu0 0
        %521 = vmatprep.subr.bf16.mxu0 0
        %522 = vmatpush2.bf16.msra.mxu0 0
        %523 = vmatprep.subr.bf16.mxu0 0
        %524 = vmatpush2.bf16.msra.mxu0 0
        %525 = vmatprep.subr.bf16.mxu0 0
        %526 = vmatpush2.bf16.msra.mxu0 0
        %527 = vmatprep.mubr.bf16.mxu0 0
        %528 = vmatmul.mubr.bf16.gmra.mxu0 %v437
        %v529 = vpop.f32.mrf.mxu0
        %v530 = vadd.f32 %v316, %v529
        %v531 = vpop.f32.mrf.mxu0
        %v532 = vadd.f32 %v320, %v531
        %v533 = vpop.f32.mrf.mxu0
        %v534 = vadd.f32 %v316, %v533
        %v535 = vpop.f32.mrf.mxu0
        %v536 = vadd.f32 %v320, %v535
        %537 = vmatprep.mubr.bf16.mxu0 0
        %538 = vmatmul.mubr.bf16.gmra.mxu0 %v440
        %v539 = vpop.f32.mrf.mxu0
        %v540 = vadd.f32 %v316, %v539
        %v541 = vpop.f32.mrf.mxu0
        %v542 = vadd.f32 %v320, %v541
        %v543 = vpop.f32.mrf.mxu0
        %v544 = vadd.f32 %v316, %v543
        %v545 = vpop.f32.mrf.mxu0
        %v546 = vadd.f32 %v320, %v545
        %547 = vdwg.mxu0
        %548 = vmatprep.subr.bf16.mxu0 0
        %549 = vmatpush1.bf16.msra.mxu0 0
        %550 = vmatprep.subr.bf16.mxu0 0
        %551 = vmatpush1.bf16.msra.mxu0 0
        %552 = vmatprep.subr.bf16.mxu0 0
        %553 = vmatpush1.bf16.msra.mxu0 0
        %554 = vmatprep.subr.bf16.mxu0 0
        %555 = vmatpush1.bf16.msra.mxu0 0
        %556 = vmatprep.subr.bf16.mxu0 0
        %557 = vmatpush1.bf16.msra.mxu0 0
        %558 = vmatprep.subr.bf16.mxu0 %v416
        %559 = vmatpush1.bf16.msra.mxu0 %v415
        %560 = vmatprep.subr.bf16.mxu0 %v410
        %561 = vmatpush1.bf16.msra.mxu0 %v409
        %562 = vmatprep.subr.bf16.mxu0 %v404
        %563 = vmatpush1.bf16.msra.mxu0 %v403
        %564 = vmatprep.subr.bf16.mxu0 0
        %565 = vmatpush2.bf16.msra.mxu0 0
        %566 = vmatprep.subr.bf16.mxu0 0
        %567 = vmatpush2.bf16.msra.mxu0 0
        %568 = vmatprep.subr.bf16.mxu0 0
        %569 = vmatpush2.bf16.msra.mxu0 0
        %570 = vmatprep.subr.bf16.mxu0 0
        %571 = vmatpush2.bf16.msra.mxu0 0
        %572 = vmatprep.subr.bf16.mxu0 0
        %573 = vmatpush2.bf16.msra.mxu0 0
        %574 = vmatprep.subr.bf16.mxu0 0
        %575 = vmatpush2.bf16.msra.mxu0 0
        %576 = vmatprep.subr.bf16.mxu0 0
        %577 = vmatpush2.bf16.msra.mxu0 0
        %578 = vmatprep.subr.bf16.mxu0 0
        %579 = vmatpush2.bf16.msra.mxu0 0
        %580 = vmatprep.mubr.bf16.mxu0 0
        %581 = vmatmul.mubr.bf16.gmra.mxu0 %v437
        %v582 = vpop.f32.mrf.mxu0
        %v583 = vadd.f32 %v324, %v582
        %v584 = vpop.f32.mrf.mxu0
        %v585 = vadd.f32 %v328, %v584
        %v586 = vpop.f32.mrf.mxu0
        %v587 = vadd.f32 %v324, %v586
        %v588 = vpop.f32.mrf.mxu0
        %v589 = vadd.f32 %v328, %v588
        %590 = vmatprep.mubr.bf16.mxu0 0
        %591 = vmatmul.mubr.bf16.gmra.mxu0 %v440
        %v592 = vpop.f32.mrf.mxu0
        %v593 = vadd.f32 %v324, %v592
        %v594 = vpop.f32.mrf.mxu0
        %v595 = vadd.f32 %v328, %v594
        %v596 = vpop.f32.mrf.mxu0
        %v597 = vadd.f32 %v324, %v596
        %v598 = vpop.f32.mrf.mxu0
        %v599 = vadd.f32 %v328, %v598
        %600 = vdwg.mxu0
        %v601 = vtanh.pop %v477
        %v602 = vtanh.pop %v479
        %v603 = vtanh.pop %v530
        %v604 = vtanh.pop %v532
        %v605 = vtanh.pop %v583
        %v606 = vtanh.pop %v585
        %v607 = vtanh.pop %v481
        %v608 = vtanh.pop %v483
        %v609 = vtanh.pop %v534
        %v610 = vtanh.pop %v536
        %v611 = vtanh.pop %v587
        %v612 = vtanh.pop %v589
        %v613 = vtanh.pop %v487
        %v614 = vtanh.pop %v489
        %v615 = vtanh.pop %v540
        %v616 = vtanh.pop %v542
        %v617 = vtanh.pop %v593
        %v618 = vtanh.pop %v595
        %v619 = vtanh.pop %v491
        %v620 = vtanh.pop %v493
        %v621 = vtanh.pop %v544
        %v622 = vtanh.pop %v546
        %v623 = vtanh.pop %v597
        %v624 = vtanh.pop %v599
        %v625 = vpack.c.bf16 %v607, %v601
        %v626 = vpack.c.bf16 %v608, %v602
        %v627 = vpack.c.bf16 %v609, %v603
        %v628 = vpack.c.bf16 %v610, %v604
        %v629 = vpack.c.bf16 %v611, %v605
        %v630 = vpack.c.bf16 %v612, %v606
        %v631 = vpack.c.bf16 %v619, %v613
        %v632 = vpack.c.bf16 %v620, %v614
        %v633 = vpack.c.bf16 %v621, %v615
        %v634 = vpack.c.bf16 %v622, %v616
        %v635 = vpack.c.bf16 %v623, %v617
        %v636 = vpack.c.bf16 %v624, %v618
        %v637 = vld [vmem:[%s3] sm:$0xff]
        %v638 = vld [vmem:[%s3 + $0x8] sm:$0xf]
        %v639 = vld [vmem:[%s3 + $0xc] sm:$0xff]
        %v640 = vld [vmem:[%s3 + $0x14] sm:$0xf]
        %v641 = vld [vmem:[%s3 + $0x18] sm:$0xff]
        %v642 = vld [vmem:[%s3 + $0x20] sm:$0xf]
        %v643 = vld [vmem:[%s3 + $0x24] sm:$0xff]
        %v644 = vld [vmem:[%s3 + $0x2c] sm:$0xf]
        %v645 = vld [vmem:[%s3 + $0x30] sm:$0xff]
        %v646 = vld [vmem:[%s3 + $0x38] sm:$0xf]
        %v647 = vld [vmem:[%s3 + $0x3c] sm:$0xff]
        %v648 = vld [vmem:[%s3 + $0x44] sm:$0xf]
        %v649 = vld [vmem:[%s3 + $0x48] sm:$0xff]
        %v650 = vld [vmem:[%s3 + $0x50] sm:$0xf]
        %v651 = vld [vmem:[%s3 + $0x54] sm:$0xff]
        %v652 = vld [vmem:[%s3 + $0x5c] sm:$0xf]
        %v653 = vld [vmem:[%s3 + $0x60] sm:$0xff]
        %v654 = vld [vmem:[%s3 + $0x68] sm:$0xf]
        %v655 = vld [vmem:[%s3 + $0x6c] sm:$0xff]
        %v656 = vld [vmem:[%s3 + $0x74] sm:$0xf]
        %v657 = vld [vmem:[%s3 + $0x78] sm:$0xff]
        %v658 = vld [vmem:[%s3 + $0x80] sm:$0xf]
        %v659 = vld [vmem:[%s3 + $0x84] sm:$0xff]
        %v660 = vld [vmem:[%s3 + $0x8c] sm:$0xf]
        %v661 = vld [vmem:[%s3 + $0x90] sm:$0xff]
        %v662 = vld [vmem:[%s3 + $0x98] sm:$0xf]
        %v663 = vld [vmem:[%s3 + $0x9c] sm:$0xff]
        %v664 = vld [vmem:[%s3 + $0xa4] sm:$0xf]
        %v665 = vld [vmem:[%s3 + $0xa8] sm:$0xff]
        %v666 = vld [vmem:[%s3 + $0xb0] sm:$0xf]
        %v667 = vld [vmem:[%s3 + $0xb4] sm:$0xff]
        %v668 = vld [vmem:[%s3 + $0xbc] sm:$0xf]
        %v669 = vld [vmem:[%s3 + $0xc0] sm:$0xff]
        %v670 = vld [vmem:[%s3 + $0xc8] sm:$0xf]
        %v671 = vld [vmem:[%s3 + $0xcc] sm:$0xff]
        %v672 = vld [vmem:[%s3 + $0xd4] sm:$0xf]
        %v673 = vld [vmem:[%s3 + $0xd8] sm:$0xff]
        %v674 = vld [vmem:[%s3 + $0xe0] sm:$0xf]
        %v675 = vld [vmem:[%s3 + $0xe4] sm:$0xff]
        %v676 = vld [vmem:[%s3 + $0xec] sm:$0xf]
        %v677 = vld [vmem:[%s3 + $0xf0] sm:$0xff]
        %v678 = vld [vmem:[%s3 + $0xf8] sm:$0xf]
        %v679 = vld [vmem:[%s3 + $0xfc] sm:$0xff]
        %v680 = vld [vmem:[%s3 + $0x104] sm:$0xf]
        %v681 = vld [vmem:[%s3 + $0x108] sm:$0xff]
        %v682 = vld [vmem:[%s3 + $0x110] sm:$0xf]
        %v683 = vld [vmem:[%s3 + $0x114] sm:$0xff]
        %v684 = vld [vmem:[%s3 + $0x11c] sm:$0xf]
        %v685 = vld [vmem:[%s3 + $0x120] sm:$0xff]
        %v686 = vld [vmem:[%s3 + $0x128] sm:$0xf]
        %v687 = vld [vmem:[%s3 + $0x12c] sm:$0xff]
        %v688 = vld [vmem:[%s3 + $0x134] sm:$0xf]
        %v689 = vld [vmem:[%s3 + $0x138] sm:$0xff]
        %v690 = vld [vmem:[%s3 + $0x140] sm:$0xf]
        %v691 = vld [vmem:[%s3 + $0x144] sm:$0xff]
        %v692 = vld [vmem:[%s3 + $0x14c] sm:$0xf]
        %v693 = vld [vmem:[%s3 + $0x150] sm:$0xff]
        %v694 = vld [vmem:[%s3 + $0x158] sm:$0xf]
        %v695 = vld [vmem:[%s3 + $0x15c] sm:$0xff]
        %v696 = vld [vmem:[%s3 + $0x164] sm:$0xf]
        %v697 = vld [vmem:[%s3 + $0x168] sm:$0xff]
        %v698 = vld [vmem:[%s3 + $0x170] sm:$0xf]
        %v699 = vld [vmem:[%s3 + $0x174] sm:$0xff]
        %v700 = vld [vmem:[%s3 + $0x17c] sm:$0xf]
        %v701 = vld [vmem:[%s3 + $0x180] sm:$0xff]
        %v702 = vld [vmem:[%s3 + $0x188] sm:$0xf]
        %v703 = vld [vmem:[%s3 + $0x18c] sm:$0xff]
        %v704 = vld [vmem:[%s3 + $0x194] sm:$0xf]
        %v705 = vld [vmem:[%s3 + $0x198] sm:$0xff]
        %v706 = vld [vmem:[%s3 + $0x1a0] sm:$0xf]
        %v707 = vld [vmem:[%s3 + $0x1a4] sm:$0xff]
        %v708 = vld [vmem:[%s3 + $0x1ac] sm:$0xf]
        %v709 = vld [vmem:[%s3 + $0x1b0] sm:$0xff]
        %v710 = vld [vmem:[%s3 + $0x1b8] sm:$0xf]
        %v711 = vld [vmem:[%s3 + $0x1bc] sm:$0xff]
        %v712 = vld [vmem:[%s3 + $0x1c4] sm:$0xf]
        %v713 = vld [vmem:[%s3 + $0x1c8] sm:$0xff]
        %v714 = vld [vmem:[%s3 + $0x1d0] sm:$0xf]
        %v715 = vld [vmem:[%s3 + $0x1d4] sm:$0xff]
        %v716 = vld [vmem:[%s3 + $0x1dc] sm:$0xf]
        %v717 = vld [vmem:[%s3 + $0x1e0] sm:$0xff]
        %v718 = vld [vmem:[%s3 + $0x1e8] sm:$0xf]
        %v719 = vld [vmem:[%s3 + $0x1ec] sm:$0xff]
        %v720 = vld [vmem:[%s3 + $0x1f4] sm:$0xf]
        %v721 = vld [vmem:[%s3 + $0x1f8] sm:$0xff]
        %v722 = vld [vmem:[%s3 + $0x200] sm:$0xf]
        %v723 = vld [vmem:[%s3 + $0x204] sm:$0xff]
        %v724 = vld [vmem:[%s3 + $0x20c] sm:$0xf]
        %v725 = vld [vmem:[%s3 + $0x210] sm:$0xff]
        %v726 = vld [vmem:[%s3 + $0x218] sm:$0xf]
        %v727 = vld [vmem:[%s3 + $0x21c] sm:$0xff]
        %v728 = vld [vmem:[%s3 + $0x224] sm:$0xf]
        %v729 = vld [vmem:[%s3 + $0x228] sm:$0xff]
        %v730 = vld [vmem:[%s3 + $0x230] sm:$0xf]
        %v731 = vld [vmem:[%s3 + $0x234] sm:$0xff]
        %v732 = vld [vmem:[%s3 + $0x23c] sm:$0xf]
        %v733 = vld [vmem:[%s3 + $0x240] sm:$0xff]
        %v734 = vld [vmem:[%s3 + $0x248] sm:$0xf]
        %v735 = vld [vmem:[%s3 + $0x24c] sm:$0xff]
        %v736 = vld [vmem:[%s3 + $0x254] sm:$0xf]
        %v737 = vld [vmem:[%s3 + $0x258] sm:$0xff]
        %v738 = vld [vmem:[%s3 + $0x260] sm:$0xf]
        %v739 = vld [vmem:[%s3 + $0x264] sm:$0xff]
        %v740 = vld [vmem:[%s3 + $0x26c] sm:$0xf]
        %v741 = vld [vmem:[%s3 + $0x270] sm:$0xff]
        %v742 = vld [vmem:[%s3 + $0x278] sm:$0xf]
        %v743 = vld [vmem:[%s3 + $0x27c] sm:$0xff]
        %v744 = vld [vmem:[%s3 + $0x284] sm:$0xf]
        %v745 = vld [vmem:[%s3 + $0x288] sm:$0xff]
        %v746 = vld [vmem:[%s3 + $0x290] sm:$0xf]
        %v747 = vld [vmem:[%s3 + $0x294] sm:$0xff]
        %v748 = vld [vmem:[%s3 + $0x29c] sm:$0xf]
        %v749 = vld [vmem:[%s3 + $0x2a0] sm:$0xff]
        %v750 = vld [vmem:[%s3 + $0x2a8] sm:$0xf]
        %v751 = vld [vmem:[%s3 + $0x2ac] sm:$0xff]
        %v752 = vld [vmem:[%s3 + $0x2b4] sm:$0xf]
        %v753 = vld [vmem:[%s3 + $0x2b8] sm:$0xff]
        %v754 = vld [vmem:[%s3 + $0x2c0] sm:$0xf]
        %v755 = vld [vmem:[%s3 + $0x2c4] sm:$0xff]
        %v756 = vld [vmem:[%s3 + $0x2cc] sm:$0xf]
        %v757 = vld [vmem:[%s3 + $0x2d0] sm:$0xff]
        %v758 = vld [vmem:[%s3 + $0x2d8] sm:$0xf]
        %v759 = vld [vmem:[%s3 + $0x2dc] sm:$0xff]
        %v760 = vld [vmem:[%s3 + $0x2e4] sm:$0xf]
        %v761 = vld [vmem:[%s3 + $0x2e8] sm:$0xff]
        %v762 = vld [vmem:[%s3 + $0x2f0] sm:$0xf]
        %v763 = vld [vmem:[%s3 + $0x2f4] sm:$0xff]
        %v764 = vld [vmem:[%s3 + $0x2fc] sm:$0xf]
        %v765 = vld [vmem:[%s3 + $0x300] sm:$0xff]
        %v766 = vld [vmem:[%s3 + $0x308] sm:$0xf]
        %v767 = vld [vmem:[%s3 + $0x30c] sm:$0xff]
        %v768 = vld [vmem:[%s3 + $0x314] sm:$0xf]
        %v769 = vld [vmem:[%s3 + $0x318] sm:$0xff]
        %v770 = vld [vmem:[%s3 + $0x320] sm:$0xf]
        %v771 = vld [vmem:[%s3 + $0x324] sm:$0xff]
        %v772 = vld [vmem:[%s3 + $0x32c] sm:$0xf]
        %v773 = vld [vmem:[%s3 + $0x330] sm:$0xff]
        %v774 = vld [vmem:[%s3 + $0x338] sm:$0xf]
        %v775 = vld [vmem:[%s3 + $0x33c] sm:$0xff]
        %v776 = vld [vmem:[%s3 + $0x344] sm:$0xf]
        %v777 = vld [vmem:[%s3 + $0x348] sm:$0xff]
        %v778 = vld [vmem:[%s3 + $0x350] sm:$0xf]
        %v779 = vld [vmem:[%s3 + $0x354] sm:$0xff]
        %v780 = vld [vmem:[%s3 + $0x35c] sm:$0xf]
        %v781 = vld [vmem:[%s3 + $0x360] sm:$0xff]
        %v782 = vld [vmem:[%s3 + $0x368] sm:$0xf]
        %v783 = vld [vmem:[%s3 + $0x36c] sm:$0xff]
        %v784 = vld [vmem:[%s3 + $0x374] sm:$0xf]
        %v785 = vld [vmem:[%s3 + $0x378] sm:$0xff]
        %v786 = vld [vmem:[%s3 + $0x380] sm:$0xf]
        %v787 = vld [vmem:[%s3 + $0x384] sm:$0xff]
        %v788 = vld [vmem:[%s3 + $0x38c] sm:$0xf]
        %v789 = vld [vmem:[%s3 + $0x390] sm:$0xff]
        %v790 = vld [vmem:[%s3 + $0x398] sm:$0xf]
        %v791 = vld [vmem:[%s3 + $0x39c] sm:$0xff]
        %v792 = vld [vmem:[%s3 + $0x3a4] sm:$0xf]
        %v793 = vld [vmem:[%s3 + $0x3a8] sm:$0xff]
        %v794 = vld [vmem:[%s3 + $0x3b0] sm:$0xf]
        %v795 = vld [vmem:[%s3 + $0x3b4] sm:$0xff]
        %v796 = vld [vmem:[%s3 + $0x3bc] sm:$0xf]
        %v797 = vld [vmem:[%s3 + $0x3c0] sm:$0xff]
        %v798 = vld [vmem:[%s3 + $0x3c8] sm:$0xf]
        %v799 = vld [vmem:[%s3 + $0x3cc] sm:$0xff]
        %v800 = vld [vmem:[%s3 + $0x3d4] sm:$0xf]
        %v801 = vld [vmem:[%s3 + $0x3d8] sm:$0xff]
        %v802 = vld [vmem:[%s3 + $0x3e0] sm:$0xf]
        %v803 = vld [vmem:[%s3 + $0x3e4] sm:$0xff]
        %v804 = vld [vmem:[%s3 + $0x3ec] sm:$0xf]
        %v805 = vld [vmem:[%s3 + $0x3f0] sm:$0xff]
        %v806 = vld [vmem:[%s3 + $0x3f8] sm:$0xf]
        %v807 = vld [vmem:[%s3 + $0x3fc] sm:$0xff]
        %v808 = vld [vmem:[%s3 + $0x404] sm:$0xf]
        %v809 = vld [vmem:[%s3 + $0x408] sm:$0xff]
        %v810 = vld [vmem:[%s3 + $0x410] sm:$0xf]
        %v811 = vld [vmem:[%s3 + $0x414] sm:$0xff]
        %v812 = vld [vmem:[%s3 + $0x41c] sm:$0xf]
        %v813 = vld [vmem:[%s3 + $0x420] sm:$0xff]
        %v814 = vld [vmem:[%s3 + $0x428] sm:$0xf]
        %v815 = vld [vmem:[%s3 + $0x42c] sm:$0xff]
        %v816 = vld [vmem:[%s3 + $0x434] sm:$0xf]
        %v817 = vld [vmem:[%s3 + $0x438] sm:$0xff]
        %v818 = vld [vmem:[%s3 + $0x440] sm:$0xf]
        %v819 = vld [vmem:[%s3 + $0x444] sm:$0xff]
        %v820 = vld [vmem:[%s3 + $0x44c] sm:$0xf]
        %v821 = vld [vmem:[%s3 + $0x450] sm:$0xff]
        %v822 = vld [vmem:[%s3 + $0x458] sm:$0xf]
        %v823 = vld [vmem:[%s3 + $0x45c] sm:$0xff]
        %v824 = vld [vmem:[%s3 + $0x464] sm:$0xf]
        %v825 = vld [vmem:[%s3 + $0x468] sm:$0xff]
        %v826 = vld [vmem:[%s3 + $0x470] sm:$0xf]
        %v827 = vld [vmem:[%s3 + $0x474] sm:$0xff]
        %v828 = vld [vmem:[%s3 + $0x47c] sm:$0xf]
        %v829 = vld [vmem:[%s4] sm:$0x7]
        %v831 = vlaneseq
        %v832 = vshrl.u32 %v831, 7
        %v833 = vsub.s32 0, %v832
        %v834 = vrot.slane %v829, %v833
        %v835 = vlaneseq
        %v836 = vshrl.u32 %v835, 7
        %v837 = vsub.s32 1, %v836
        %v838 = vrot.slane %v829, %v837
        %v839 = vlaneseq
        %v840 = vshrl.u32 %v839, 7
        %v841 = vsub.s32 2, %v840
        %v842 = vrot.slane %v829, %v841
        %v1038 = vunpack.c.l.b16 %v637
        %v1039 = vunpack.c.h.b16 %v637
        %v1040 = vunpack.c.l.b16 %v638
        %v1041 = vunpack.c.l.b16 %v639
        %v1042 = vunpack.c.h.b16 %v639
        %v1043 = vunpack.c.l.b16 %v640
        %v1044 = vunpack.c.l.b16 %v641
        %v1045 = vunpack.c.h.b16 %v641
        %v1046 = vunpack.c.l.b16 %v642
        %v1047 = vunpack.c.l.b16 %v643
        %v1048 = vunpack.c.h.b16 %v643
        %v1049 = vunpack.c.l.b16 %v644
        %v1050 = vunpack.c.l.b16 %v645
        %v1051 = vunpack.c.h.b16 %v645
        %v1052 = vunpack.c.l.b16 %v646
        %v1053 = vunpack.c.l.b16 %v647
        %v1054 = vunpack.c.h.b16 %v647
        %v1055 = vunpack.c.l.b16 %v648
        %v1056 = vunpack.c.l.b16 %v649
        %v1057 = vunpack.c.h.b16 %v649
        %v1058 = vunpack.c.l.b16 %v650
        %v1059 = vunpack.c.l.b16 %v651
        %v1060 = vunpack.c.h.b16 %v651
        %v1061 = vunpack.c.l.b16 %v652
        %v1062 = vunpack.c.l.b16 %v653
        %v1063 = vunpack.c.h.b16 %v653
        %v1064 = vunpack.c.l.b16 %v654
        %v1065 = vunpack.c.l.b16 %v655
        %v1066 = vunpack.c.h.b16 %v655
        %v1067 = vunpack.c.l.b16 %v656
        %v1068 = vunpack.c.l.b16 %v657
        %v1069 = vunpack.c.h.b16 %v657
        %v1070 = vunpack.c.l.b16 %v658
        %v1071 = vunpack.c.l.b16 %v659
        %v1072 = vunpack.c.h.b16 %v659
        %v1073 = vunpack.c.l.b16 %v660
        %v1074 = vunpack.c.l.b16 %v661
        %v1075 = vunpack.c.h.b16 %v661
        %v1076 = vunpack.c.l.b16 %v662
        %v1077 = vunpack.c.l.b16 %v663
        %v1078 = vunpack.c.h.b16 %v663
        %v1079 = vunpack.c.l.b16 %v664
        %v1080 = vunpack.c.l.b16 %v665
        %v1081 = vunpack.c.h.b16 %v665
        %v1082 = vunpack.c.l.b16 %v666
        %v1083 = vunpack.c.l.b16 %v667
        %v1084 = vunpack.c.h.b16 %v667
        %v1085 = vunpack.c.l.b16 %v668
        %v1086 = vunpack.c.l.b16 %v669
        %v1087 = vunpack.c.h.b16 %v669
        %v1088 = vunpack.c.l.b16 %v670
        %v1089 = vunpack.c.l.b16 %v671
        %v1090 = vunpack.c.h.b16 %v671
        %v1091 = vunpack.c.l.b16 %v672
        %v1092 = vunpack.c.l.b16 %v673
        %v1093 = vunpack.c.h.b16 %v673
        %v1094 = vunpack.c.l.b16 %v674
        %v1095 = vunpack.c.l.b16 %v675
        %v1096 = vunpack.c.h.b16 %v675
        %v1097 = vunpack.c.l.b16 %v676
        %v1098 = vunpack.c.l.b16 %v677
        %v1099 = vunpack.c.h.b16 %v677
        %v1100 = vunpack.c.l.b16 %v678
        %v1101 = vunpack.c.l.b16 %v679
        %v1102 = vunpack.c.h.b16 %v679
        %v1103 = vunpack.c.l.b16 %v680
        %v1104 = vunpack.c.l.b16 %v681
        %v1105 = vunpack.c.h.b16 %v681
        %v1106 = vunpack.c.l.b16 %v682
        %v1107 = vunpack.c.l.b16 %v683
        %v1108 = vunpack.c.h.b16 %v683
        %v1109 = vunpack.c.l.b16 %v684
        %v1110 = vunpack.c.l.b16 %v685
        %v1111 = vunpack.c.h.b16 %v685
        %v1112 = vunpack.c.l.b16 %v686
        %v1113 = vunpack.c.l.b16 %v687
        %v1114 = vunpack.c.h.b16 %v687
        %v1115 = vunpack.c.l.b16 %v688
        %v1116 = vunpack.c.l.b16 %v689
        %v1117 = vunpack.c.h.b16 %v689
        %v1118 = vunpack.c.l.b16 %v690
        %v1119 = vunpack.c.l.b16 %v691
        %v1120 = vunpack.c.h.b16 %v691
        %v1121 = vunpack.c.l.b16 %v692
        %v1122 = vunpack.c.l.b16 %v693
        %v1123 = vunpack.c.h.b16 %v693
        %v1124 = vunpack.c.l.b16 %v694
        %v1125 = vunpack.c.l.b16 %v695
        %v1126 = vunpack.c.h.b16 %v695
        %v1127 = vunpack.c.l.b16 %v696
        %v1128 = vunpack.c.l.b16 %v697
        %v1129 = vunpack.c.h.b16 %v697
        %v1130 = vunpack.c.l.b16 %v698
        %v1131 = vunpack.c.l.b16 %v699
        %v1132 = vunpack.c.h.b16 %v699
        %v1133 = vunpack.c.l.b16 %v700
        %v1134 = vunpack.c.l.b16 %v701
        %v1135 = vunpack.c.h.b16 %v701
        %v1136 = vunpack.c.l.b16 %v702
        %v1137 = vunpack.c.l.b16 %v703
        %v1138 = vunpack.c.h.b16 %v703
        %v1139 = vunpack.c.l.b16 %v704
        %v1140 = vunpack.c.l.b16 %v705
        %v1141 = vunpack.c.h.b16 %v705
        %v1142 = vunpack.c.l.b16 %v706
        %v1143 = vunpack.c.l.b16 %v707
        %v1144 = vunpack.c.h.b16 %v707
        %v1145 = vunpack.c.l.b16 %v708
        %v1146 = vunpack.c.l.b16 %v709
        %v1147 = vunpack.c.h.b16 %v709
        %v1148 = vunpack.c.l.b16 %v710
        %v1149 = vunpack.c.l.b16 %v711
        %v1150 = vunpack.c.h.b16 %v711
        %v1151 = vunpack.c.l.b16 %v712
        %v1152 = vunpack.c.l.b16 %v713
        %v1153 = vunpack.c.h.b16 %v713
        %v1154 = vunpack.c.l.b16 %v714
        %v1155 = vunpack.c.l.b16 %v715
        %v1156 = vunpack.c.h.b16 %v715
        %v1157 = vunpack.c.l.b16 %v716
        %v1158 = vunpack.c.l.b16 %v717
        %v1159 = vunpack.c.h.b16 %v717
        %v1160 = vunpack.c.l.b16 %v718
        %v1161 = vunpack.c.l.b16 %v719
        %v1162 = vunpack.c.h.b16 %v719
        %v1163 = vunpack.c.l.b16 %v720
        %v1164 = vunpack.c.l.b16 %v721
        %v1165 = vunpack.c.h.b16 %v721
        %v1166 = vunpack.c.l.b16 %v722
        %v1167 = vunpack.c.l.b16 %v723
        %v1168 = vunpack.c.h.b16 %v723
        %v1169 = vunpack.c.l.b16 %v724
        %v1170 = vunpack.c.l.b16 %v725
        %v1171 = vunpack.c.h.b16 %v725
        %v1172 = vunpack.c.l.b16 %v726
        %v1173 = vunpack.c.l.b16 %v727
        %v1174 = vunpack.c.h.b16 %v727
        %v1175 = vunpack.c.l.b16 %v728
        %v1176 = vunpack.c.l.b16 %v729
        %v1177 = vunpack.c.h.b16 %v729
        %v1178 = vunpack.c.l.b16 %v730
        %v1179 = vunpack.c.l.b16 %v731
        %v1180 = vunpack.c.h.b16 %v731
        %v1181 = vunpack.c.l.b16 %v732
        %v1182 = vunpack.c.l.b16 %v733
        %v1183 = vunpack.c.h.b16 %v733
        %v1184 = vunpack.c.l.b16 %v734
        %v1185 = vunpack.c.l.b16 %v735
        %v1186 = vunpack.c.h.b16 %v735
        %v1187 = vunpack.c.l.b16 %v736
        %v1188 = vunpack.c.l.b16 %v737
        %v1189 = vunpack.c.h.b16 %v737
        %v1190 = vunpack.c.l.b16 %v738
        %v1191 = vunpack.c.l.b16 %v739
        %v1192 = vunpack.c.h.b16 %v739
        %v1193 = vunpack.c.l.b16 %v740
        %v1194 = vunpack.c.l.b16 %v741
        %v1195 = vunpack.c.h.b16 %v741
        %v1196 = vunpack.c.l.b16 %v742
        %v1197 = vunpack.c.l.b16 %v743
        %v1198 = vunpack.c.h.b16 %v743
        %v1199 = vunpack.c.l.b16 %v744
        %v1200 = vunpack.c.l.b16 %v745
        %v1201 = vunpack.c.h.b16 %v745
        %v1202 = vunpack.c.l.b16 %v746
        %v1203 = vunpack.c.l.b16 %v747
        %v1204 = vunpack.c.h.b16 %v747
        %v1205 = vunpack.c.l.b16 %v748
        %v1206 = vunpack.c.l.b16 %v749
        %v1207 = vunpack.c.h.b16 %v749
        %v1208 = vunpack.c.l.b16 %v750
        %v1209 = vunpack.c.l.b16 %v751
        %v1210 = vunpack.c.h.b16 %v751
        %v1211 = vunpack.c.l.b16 %v752
        %v1212 = vunpack.c.l.b16 %v753
        %v1213 = vunpack.c.h.b16 %v753
        %v1214 = vunpack.c.l.b16 %v754
        %v1215 = vunpack.c.l.b16 %v755
        %v1216 = vunpack.c.h.b16 %v755
        %v1217 = vunpack.c.l.b16 %v756
        %v1218 = vunpack.c.l.b16 %v757
        %v1219 = vunpack.c.h.b16 %v757
        %v1220 = vunpack.c.l.b16 %v758
        %v1221 = vunpack.c.l.b16 %v759
        %v1222 = vunpack.c.h.b16 %v759
        %v1223 = vunpack.c.l.b16 %v760
        %v1224 = vunpack.c.l.b16 %v761
        %v1225 = vunpack.c.h.b16 %v761
        %v1226 = vunpack.c.l.b16 %v762
        %v1227 = vunpack.c.l.b16 %v763
        %v1228 = vunpack.c.h.b16 %v763
        %v1229 = vunpack.c.l.b16 %v764
        %v1230 = vunpack.c.l.b16 %v765
        %v1231 = vunpack.c.h.b16 %v765
        %v1232 = vunpack.c.l.b16 %v766
        %v1233 = vunpack.c.l.b16 %v767
        %v1234 = vunpack.c.h.b16 %v767
        %v1235 = vunpack.c.l.b16 %v768
        %v1236 = vunpack.c.l.b16 %v769
        %v1237 = vunpack.c.h.b16 %v769
        %v1238 = vunpack.c.l.b16 %v770
        %v1239 = vunpack.c.l.b16 %v771
        %v1240 = vunpack.c.h.b16 %v771
        %v1241 = vunpack.c.l.b16 %v772
        %v1242 = vunpack.c.l.b16 %v773
        %v1243 = vunpack.c.h.b16 %v773
        %v1244 = vunpack.c.l.b16 %v774
        %v1245 = vunpack.c.l.b16 %v775
        %v1246 = vunpack.c.h.b16 %v775
        %v1247 = vunpack.c.l.b16 %v776
        %v1248 = vunpack.c.l.b16 %v777
        %v1249 = vunpack.c.h.b16 %v777
        %v1250 = vunpack.c.l.b16 %v778
        %v1251 = vunpack.c.l.b16 %v779
        %v1252 = vunpack.c.h.b16 %v779
        %v1253 = vunpack.c.l.b16 %v780
        %v1254 = vunpack.c.l.b16 %v781
        %v1255 = vunpack.c.h.b16 %v781
        %v1256 = vunpack.c.l.b16 %v782
        %v1257 = vunpack.c.l.b16 %v783
        %v1258 = vunpack.c.h.b16 %v783
        %v1259 = vunpack.c.l.b16 %v784
        %v1260 = vunpack.c.l.b16 %v785
        %v1261 = vunpack.c.h.b16 %v785
        %v1262 = vunpack.c.l.b16 %v786
        %v1263 = vunpack.c.l.b16 %v787
        %v1264 = vunpack.c.h.b16 %v787
        %v1265 = vunpack.c.l.b16 %v788
        %v1266 = vunpack.c.l.b16 %v789
        %v1267 = vunpack.c.h.b16 %v789
        %v1268 = vunpack.c.l.b16 %v790
        %v1269 = vunpack.c.l.b16 %v791
        %v1270 = vunpack.c.h.b16 %v791
        %v1271 = vunpack.c.l.b16 %v792
        %v1272 = vunpack.c.l.b16 %v793
        %v1273 = vunpack.c.h.b16 %v793
        %v1274 = vunpack.c.l.b16 %v794
        %v1275 = vunpack.c.l.b16 %v795
        %v1276 = vunpack.c.h.b16 %v795
        %v1277 = vunpack.c.l.b16 %v796
        %v1278 = vunpack.c.l.b16 %v797
        %v1279 = vunpack.c.h.b16 %v797
        %v1280 = vunpack.c.l.b16 %v798
        %v1281 = vunpack.c.l.b16 %v799
        %v1282 = vunpack.c.h.b16 %v799
        %v1283 = vunpack.c.l.b16 %v800
        %v1284 = vunpack.c.l.b16 %v801
        %v1285 = vunpack.c.h.b16 %v801
        %v1286 = vunpack.c.l.b16 %v802
        %v1287 = vunpack.c.l.b16 %v803
        %v1288 = vunpack.c.h.b16 %v803
        %v1289 = vunpack.c.l.b16 %v804
        %v1290 = vunpack.c.l.b16 %v805
        %v1291 = vunpack.c.h.b16 %v805
        %v1292 = vunpack.c.l.b16 %v806
        %v1293 = vunpack.c.l.b16 %v807
        %v1294 = vunpack.c.h.b16 %v807
        %v1295 = vunpack.c.l.b16 %v808
        %v1296 = vunpack.c.l.b16 %v809
        %v1297 = vunpack.c.h.b16 %v809
        %v1298 = vunpack.c.l.b16 %v810
        %v1299 = vunpack.c.l.b16 %v811
        %v1300 = vunpack.c.h.b16 %v811
        %v1301 = vunpack.c.l.b16 %v812
        %v1302 = vunpack.c.l.b16 %v813
        %v1303 = vunpack.c.h.b16 %v813
        %v1304 = vunpack.c.l.b16 %v814
        %v1305 = vunpack.c.l.b16 %v815
        %v1306 = vunpack.c.h.b16 %v815
        %v1307 = vunpack.c.l.b16 %v816
        %v1308 = vunpack.c.l.b16 %v817
        %v1309 = vunpack.c.h.b16 %v817
        %v1310 = vunpack.c.l.b16 %v818
        %v1311 = vunpack.c.l.b16 %v819
        %v1312 = vunpack.c.h.b16 %v819
        %v1313 = vunpack.c.l.b16 %v820
        %v1314 = vunpack.c.l.b16 %v821
        %v1315 = vunpack.c.h.b16 %v821
        %v1316 = vunpack.c.l.b16 %v822
        %v1317 = vunpack.c.l.b16 %v823
        %v1318 = vunpack.c.h.b16 %v823
        %v1319 = vunpack.c.l.b16 %v824
        %v1320 = vunpack.c.l.b16 %v825
        %v1321 = vunpack.c.h.b16 %v825
        %v1322 = vunpack.c.l.b16 %v826
        %v1323 = vunpack.c.l.b16 %v827
        %v1324 = vunpack.c.h.b16 %v827
        %v1325 = vunpack.c.l.b16 %v828
        %v1326 = vpack.c.b16 %v1041, %v1038
        %v1327 = vpack.c.b16 %v1042, %v1039
        %v1328 = vpack.c.b16 %v1043, %v1040
        %v1329 = vpack.c.b16 %v1047, %v1044
        %v1330 = vpack.c.b16 %v1048, %v1045
        %v1331 = vpack.c.b16 %v1049, %v1046
        %v1332 = vpack.c.b16 %v1053, %v1050
        %v1333 = vpack.c.b16 %v1054, %v1051
        %v1334 = vpack.c.b16 %v1055, %v1052
        %v1335 = vpack.c.b16 %v1059, %v1056
        %v1336 = vpack.c.b16 %v1060, %v1057
        %v1337 = vpack.c.b16 %v1061, %v1058
        %v1338 = vpack.c.b16 %v1065, %v1062
        %v1339 = vpack.c.b16 %v1066, %v1063
        %v1340 = vpack.c.b16 %v1067, %v1064
        %v1341 = vpack.c.b16 %v1071, %v1068
        %v1342 = vpack.c.b16 %v1072, %v1069
        %v1343 = vpack.c.b16 %v1073, %v1070
        %v1344 = vpack.c.b16 %v1077, %v1074
        %v1345 = vpack.c.b16 %v1078, %v1075
        %v1346 = vpack.c.b16 %v1079, %v1076
        %v1347 = vpack.c.b16 %v1083, %v1080
        %v1348 = vpack.c.b16 %v1084, %v1081
        %v1349 = vpack.c.b16 %v1085, %v1082
        %v1350 = vpack.c.b16 %v1089, %v1086
        %v1351 = vpack.c.b16 %v1090, %v1087
        %v1352 = vpack.c.b16 %v1091, %v1088
        %v1353 = vpack.c.b16 %v1095, %v1092
        %v1354 = vpack.c.b16 %v1096, %v1093
        %v1355 = vpack.c.b16 %v1097, %v1094
        %v1356 = vpack.c.b16 %v1101, %v1098
        %v1357 = vpack.c.b16 %v1102, %v1099
        %v1358 = vpack.c.b16 %v1103, %v1100
        %v1359 = vpack.c.b16 %v1107, %v1104
        %v1360 = vpack.c.b16 %v1108, %v1105
        %v1361 = vpack.c.b16 %v1109, %v1106
        %v1362 = vpack.c.b16 %v1113, %v1110
        %v1363 = vpack.c.b16 %v1114, %v1111
        %v1364 = vpack.c.b16 %v1115, %v1112
        %v1365 = vpack.c.b16 %v1119, %v1116
        %v1366 = vpack.c.b16 %v1120, %v1117
        %v1367 = vpack.c.b16 %v1121, %v1118
        %v1368 = vpack.c.b16 %v1125, %v1122
        %v1369 = vpack.c.b16 %v1126, %v1123
        %v1370 = vpack.c.b16 %v1127, %v1124
        %v1371 = vpack.c.b16 %v1131, %v1128
        %v1372 = vpack.c.b16 %v1132, %v1129
        %v1373 = vpack.c.b16 %v1133, %v1130
        %v1374 = vpack.c.b16 %v1137, %v1134
        %v1375 = vpack.c.b16 %v1138, %v1135
        %v1376 = vpack.c.b16 %v1139, %v1136
        %v1377 = vpack.c.b16 %v1143, %v1140
        %v1378 = vpack.c.b16 %v1144, %v1141
        %v1379 = vpack.c.b16 %v1145, %v1142
        %v1380 = vpack.c.b16 %v1149, %v1146
        %v1381 = vpack.c.b16 %v1150, %v1147
        %v1382 = vpack.c.b16 %v1151, %v1148
        %v1383 = vpack.c.b16 %v1155, %v1152
        %v1384 = vpack.c.b16 %v1156, %v1153
        %v1385 = vpack.c.b16 %v1157, %v1154
        %v1386 = vpack.c.b16 %v1161, %v1158
        %v1387 = vpack.c.b16 %v1162, %v1159
        %v1388 = vpack.c.b16 %v1163, %v1160
        %v1389 = vpack.c.b16 %v1167, %v1164
        %v1390 = vpack.c.b16 %v1168, %v1165
        %v1391 = vpack.c.b16 %v1169, %v1166
        %v1392 = vpack.c.b16 %v1173, %v1170
        %v1393 = vpack.c.b16 %v1174, %v1171
        %v1394 = vpack.c.b16 %v1175, %v1172
        %v1395 = vpack.c.b16 %v1179, %v1176
        %v1396 = vpack.c.b16 %v1180, %v1177
        %v1397 = vpack.c.b16 %v1181, %v1178
        %v1398 = vpack.c.b16 %v1185, %v1182
        %v1399 = vpack.c.b16 %v1186, %v1183
        %v1400 = vpack.c.b16 %v1187, %v1184
        %v1401 = vpack.c.b16 %v1191, %v1188
        %v1402 = vpack.c.b16 %v1192, %v1189
        %v1403 = vpack.c.b16 %v1193, %v1190
        %v1404 = vpack.c.b16 %v1197, %v1194
        %v1405 = vpack.c.b16 %v1198, %v1195
        %v1406 = vpack.c.b16 %v1199, %v1196
        %v1407 = vpack.c.b16 %v1203, %v1200
        %v1408 = vpack.c.b16 %v1204, %v1201
        %v1409 = vpack.c.b16 %v1205, %v1202
        %v1410 = vpack.c.b16 %v1209, %v1206
        %v1411 = vpack.c.b16 %v1210, %v1207
        %v1412 = vpack.c.b16 %v1211, %v1208
        %v1413 = vpack.c.b16 %v1215, %v1212
        %v1414 = vpack.c.b16 %v1216, %v1213
        %v1415 = vpack.c.b16 %v1217, %v1214
        %v1416 = vpack.c.b16 %v1221, %v1218
        %v1417 = vpack.c.b16 %v1222, %v1219
        %v1418 = vpack.c.b16 %v1223, %v1220
        %v1419 = vpack.c.b16 %v1227, %v1224
        %v1420 = vpack.c.b16 %v1228, %v1225
        %v1421 = vpack.c.b16 %v1229, %v1226
        %v1422 = vpack.c.b16 %v1233, %v1230
        %v1423 = vpack.c.b16 %v1234, %v1231
        %v1424 = vpack.c.b16 %v1235, %v1232
        %v1425 = vpack.c.b16 %v1239, %v1236
        %v1426 = vpack.c.b16 %v1240, %v1237
        %v1427 = vpack.c.b16 %v1241, %v1238
        %v1428 = vpack.c.b16 %v1245, %v1242
        %v1429 = vpack.c.b16 %v1246, %v1243
        %v1430 = vpack.c.b16 %v1247, %v1244
        %v1431 = vpack.c.b16 %v1251, %v1248
        %v1432 = vpack.c.b16 %v1252, %v1249
        %v1433 = vpack.c.b16 %v1253, %v1250
        %v1434 = vpack.c.b16 %v1257, %v1254
        %v1435 = vpack.c.b16 %v1258, %v1255
        %v1436 = vpack.c.b16 %v1259, %v1256
        %v1437 = vpack.c.b16 %v1263, %v1260
        %v1438 = vpack.c.b16 %v1264, %v1261
        %v1439 = vpack.c.b16 %v1265, %v1262
        %v1440 = vpack.c.b16 %v1269, %v1266
        %v1441 = vpack.c.b16 %v1270, %v1267
        %v1442 = vpack.c.b16 %v1271, %v1268
        %v1443 = vpack.c.b16 %v1275, %v1272
        %v1444 = vpack.c.b16 %v1276, %v1273
        %v1445 = vpack.c.b16 %v1277, %v1274
        %v1446 = vpack.c.b16 %v1281, %v1278
        %v1447 = vpack.c.b16 %v1282, %v1279
        %v1448 = vpack.c.b16 %v1283, %v1280
        %v1449 = vpack.c.b16 %v1287, %v1284
        %v1450 = vpack.c.b16 %v1288, %v1285
        %v1451 = vpack.c.b16 %v1289, %v1286
        %v1452 = vpack.c.b16 %v1293, %v1290
        %v1453 = vpack.c.b16 %v1294, %v1291
        %v1454 = vpack.c.b16 %v1295, %v1292
        %v1455 = vpack.c.b16 %v1299, %v1296
        %v1456 = vpack.c.b16 %v1300, %v1297
        %v1457 = vpack.c.b16 %v1301, %v1298
        %v1458 = vpack.c.b16 %v1305, %v1302
        %v1459 = vpack.c.b16 %v1306, %v1303
        %v1460 = vpack.c.b16 %v1307, %v1304
        %v1461 = vpack.c.b16 %v1311, %v1308
        %v1462 = vpack.c.b16 %v1312, %v1309
        %v1463 = vpack.c.b16 %v1313, %v1310
        %v1464 = vpack.c.b16 %v1317, %v1314
        %v1465 = vpack.c.b16 %v1318, %v1315
        %v1466 = vpack.c.b16 %v1319, %v1316
        %v1467 = vpack.c.b16 %v1323, %v1320
        %v1468 = vpack.c.b16 %v1324, %v1321
        %v1469 = vpack.c.b16 %v1325, %v1322
        %1614 = vmatprep.subr.bf16.mxu0 %v1348
        %1615 = vmatpush1.bf16.msra.mxu0 %v1347
        %1616 = vmatprep.subr.bf16.mxu0 %v1345
        %1617 = vmatpush1.bf16.msra.mxu0 %v1344
        %1618 = vmatprep.subr.bf16.mxu0 %v1342
        %1619 = vmatpush1.bf16.msra.mxu0 %v1341
        %1620 = vmatprep.subr.bf16.mxu0 %v1339
        %1621 = vmatpush1.bf16.msra.mxu0 %v1338
        %1622 = vmatprep.subr.bf16.mxu0 %v1336
        %1623 = vmatpush1.bf16.msra.mxu0 %v1335
        %1624 = vmatprep.subr.bf16.mxu0 %v1333
        %1625 = vmatpush1.bf16.msra.mxu0 %v1332
        %1626 = vmatprep.subr.bf16.mxu0 %v1330
        %1627 = vmatpush1.bf16.msra.mxu0 %v1329
        %1628 = vmatprep.subr.bf16.mxu0 %v1327
        %1629 = vmatpush1.bf16.msra.mxu0 %v1326
        %1630 = vmatprep.subr.bf16.mxu0 %v1372
        %1631 = vmatpush2.bf16.msra.mxu0 %v1371
        %1632 = vmatprep.subr.bf16.mxu0 %v1369
        %1633 = vmatpush2.bf16.msra.mxu0 %v1368
        %1634 = vmatprep.subr.bf16.mxu0 %v1366
        %1635 = vmatpush2.bf16.msra.mxu0 %v1365
        %1636 = vmatprep.subr.bf16.mxu0 %v1363
        %1637 = vmatpush2.bf16.msra.mxu0 %v1362
        %1638 = vmatprep.subr.bf16.mxu0 %v1360
        %1639 = vmatpush2.bf16.msra.mxu0 %v1359
        %1640 = vmatprep.subr.bf16.mxu0 %v1357
        %1641 = vmatpush2.bf16.msra.mxu0 %v1356
        %1642 = vmatprep.subr.bf16.mxu0 %v1354
        %1643 = vmatpush2.bf16.msra.mxu0 %v1353
        %1644 = vmatprep.subr.bf16.mxu0 %v1351
        %1645 = vmatpush2.bf16.msra.mxu0 %v1350
        %1646 = vmatprep.mubr.bf16.mxu0 %v626
        %1647 = vmatmul.mubr.bf16.gmra.mxu0 %v625
        %v1648 = vpop.f32.mrf.mxu0
        %v1649 = vadd.f32 %v834, %v1648
        %v1650 = vpop.f32.mrf.mxu0
        %v1651 = vadd.f32 %v838, %v1650
        %v1652 = vpop.f32.mrf.mxu0
        %v1653 = vadd.f32 %v834, %v1652
        %v1654 = vpop.f32.mrf.mxu0
        %v1655 = vadd.f32 %v838, %v1654
        %1656 = vmatprep.mubr.bf16.mxu0 %v632
        %1657 = vmatmul.mubr.bf16.gmra.mxu0 %v631
        %v1658 = vpop.f32.mrf.mxu0
        %v1659 = vadd.f32 %v834, %v1658
        %v1660 = vpop.f32.mrf.mxu0
        %v1661 = vadd.f32 %v838, %v1660
        %v1662 = vpop.f32.mrf.mxu0
        %v1663 = vadd.f32 %v834, %v1662
        %v1664 = vpop.f32.mrf.mxu0
        %v1665 = vadd.f32 %v838, %v1664
        %1666 = vdwg.mxu0
        %1667 = vmatprep.subr.bf16.mxu0 %v1396
        %1668 = vmatpush1.bf16.msra.mxu0 %v1395
        %1669 = vmatprep.subr.bf16.mxu0 %v1393
        %1670 = vmatpush1.bf16.msra.mxu0 %v1392
        %1671 = vmatprep.subr.bf16.mxu0 %v1390
        %1672 = vmatpush1.bf16.msra.mxu0 %v1389
        %1673 = vmatprep.subr.bf16.mxu0 %v1387
        %1674 = vmatpush1.bf16.msra.mxu0 %v1386
        %1675 = vmatprep.subr.bf16.mxu0 %v1384
        %1676 = vmatpush1.bf16.msra.mxu0 %v1383
        %1677 = vmatprep.subr.bf16.mxu0 %v1381
        %1678 = vmatpush1.bf16.msra.mxu0 %v1380
        %1679 = vmatprep.subr.bf16.mxu0 %v1378
        %1680 = vmatpush1.bf16.msra.mxu0 %v1377
        %1681 = vmatprep.subr.bf16.mxu0 %v1375
        %1682 = vmatpush1.bf16.msra.mxu0 %v1374
        %1683 = vmatprep.subr.bf16.mxu0 %v1420
        %1684 = vmatpush2.bf16.msra.mxu0 %v1419
        %1685 = vmatprep.subr.bf16.mxu0 %v1417
        %1686 = vmatpush2.bf16.msra.mxu0 %v1416
        %1687 = vmatprep.subr.bf16.mxu0 %v1414
        %1688 = vmatpush2.bf16.msra.mxu0 %v1413
        %1689 = vmatprep.subr.bf16.mxu0 %v1411
        %1690 = vmatpush2.bf16.msra.mxu0 %v1410
        %1691 = vmatprep.subr.bf16.mxu0 %v1408
        %1692 = vmatpush2.bf16.msra.mxu0 %v1407
        %1693 = vmatprep.subr.bf16.mxu0 %v1405
        %1694 = vmatpush2.bf16.msra.mxu0 %v1404
        %1695 = vmatprep.subr.bf16.mxu0 %v1402
        %1696 = vmatpush2.bf16.msra.mxu0 %v1401
        %1697 = vmatprep.subr.bf16.mxu0 %v1399
        %1698 = vmatpush2.bf16.msra.mxu0 %v1398
        %1699 = vmatprep.mubr.bf16.mxu0 %v628
        %1700 = vmatmul.mubr.bf16.gmra.mxu0 %v627
        %v1701 = vpop.f32.mrf.mxu0
        %v1702 = vadd.f32 %v1649, %v1701
        %v1703 = vpop.f32.mrf.mxu0
        %v1704 = vadd.f32 %v1651, %v1703
        %v1705 = vpop.f32.mrf.mxu0
        %v1706 = vadd.f32 %v1653, %v1705
        %v1707 = vpop.f32.mrf.mxu0
        %v1708 = vadd.f32 %v1655, %v1707
        %1709 = vmatprep.mubr.bf16.mxu0 %v634
        %1710 = vmatmul.mubr.bf16.gmra.mxu0 %v633
        %v1711 = vpop.f32.mrf.mxu0
        %v1712 = vadd.f32 %v1659, %v1711
        %v1713 = vpop.f32.mrf.mxu0
        %v1714 = vadd.f32 %v1661, %v1713
        %v1715 = vpop.f32.mrf.mxu0
        %v1716 = vadd.f32 %v1663, %v1715
        %v1717 = vpop.f32.mrf.mxu0
        %v1718 = vadd.f32 %v1665, %v1717
        %1719 = vdwg.mxu0
        %1720 = vmatprep.subr.bf16.mxu0 %v1444
        %1721 = vmatpush1.bf16.msra.mxu0 %v1443
        %1722 = vmatprep.subr.bf16.mxu0 %v1441
        %1723 = vmatpush1.bf16.msra.mxu0 %v1440
        %1724 = vmatprep.subr.bf16.mxu0 %v1438
        %1725 = vmatpush1.bf16.msra.mxu0 %v1437
        %1726 = vmatprep.subr.bf16.mxu0 %v1435
        %1727 = vmatpush1.bf16.msra.mxu0 %v1434
        %1728 = vmatprep.subr.bf16.mxu0 %v1432
        %1729 = vmatpush1.bf16.msra.mxu0 %v1431
        %1730 = vmatprep.subr.bf16.mxu0 %v1429
        %1731 = vmatpush1.bf16.msra.mxu0 %v1428
        %1732 = vmatprep.subr.bf16.mxu0 %v1426
        %1733 = vmatpush1.bf16.msra.mxu0 %v1425
        %1734 = vmatprep.subr.bf16.mxu0 %v1423
        %1735 = vmatpush1.bf16.msra.mxu0 %v1422
        %1736 = vmatprep.subr.bf16.mxu0 %v1468
        %1737 = vmatpush2.bf16.msra.mxu0 %v1467
        %1738 = vmatprep.subr.bf16.mxu0 %v1465
        %1739 = vmatpush2.bf16.msra.mxu0 %v1464
        %1740 = vmatprep.subr.bf16.mxu0 %v1462
        %1741 = vmatpush2.bf16.msra.mxu0 %v1461
        %1742 = vmatprep.subr.bf16.mxu0 %v1459
        %1743 = vmatpush2.bf16.msra.mxu0 %v1458
        %1744 = vmatprep.subr.bf16.mxu0 %v1456
        %1745 = vmatpush2.bf16.msra.mxu0 %v1455
        %1746 = vmatprep.subr.bf16.mxu0 %v1453
        %1747 = vmatpush2.bf16.msra.mxu0 %v1452
        %1748 = vmatprep.subr.bf16.mxu0 %v1450
        %1749 = vmatpush2.bf16.msra.mxu0 %v1449
        %1750 = vmatprep.subr.bf16.mxu0 %v1447
        %1751 = vmatpush2.bf16.msra.mxu0 %v1446
        %1752 = vmatprep.mubr.bf16.mxu0 %v630
        %1753 = vmatmul.mubr.bf16.gmra.mxu0 %v629
        %v1754 = vpop.f32.mrf.mxu0
        %v1755 = vadd.f32 %v1702, %v1754
        %v1756 = vpop.f32.mrf.mxu0
        %v1757 = vadd.f32 %v1704, %v1756
        %v1758 = vpop.f32.mrf.mxu0
        %v1759 = vadd.f32 %v1706, %v1758
        %v1760 = vpop.f32.mrf.mxu0
        %v1761 = vadd.f32 %v1708, %v1760
        %1762 = vmatprep.mubr.bf16.mxu0 %v636
        %1763 = vmatmul.mubr.bf16.gmra.mxu0 %v635
        %v1764 = vpop.f32.mrf.mxu0
        %v1765 = vadd.f32 %v1712, %v1764
        %v1766 = vpop.f32.mrf.mxu0
        %v1767 = vadd.f32 %v1714, %v1766
        %v1768 = vpop.f32.mrf.mxu0
        %v1769 = vadd.f32 %v1716, %v1768
        %v1770 = vpop.f32.mrf.mxu0
        %v1771 = vadd.f32 %v1718, %v1770
        %1772 = vdwg.mxu0
        %1773 = vmatprep.subr.bf16.mxu0 0
        %1774 = vmatpush1.bf16.msra.mxu0 %v1349
        %1775 = vmatprep.subr.bf16.mxu0 0
        %1776 = vmatpush1.bf16.msra.mxu0 %v1346
        %1777 = vmatprep.subr.bf16.mxu0 0
        %1778 = vmatpush1.bf16.msra.mxu0 %v1343
        %1779 = vmatprep.subr.bf16.mxu0 0
        %1780 = vmatpush1.bf16.msra.mxu0 %v1340
        %1781 = vmatprep.subr.bf16.mxu0 0
        %1782 = vmatpush1.bf16.msra.mxu0 %v1337
        %1783 = vmatprep.subr.bf16.mxu0 0
        %1784 = vmatpush1.bf16.msra.mxu0 %v1334
        %1785 = vmatprep.subr.bf16.mxu0 0
        %1786 = vmatpush1.bf16.msra.mxu0 %v1331
        %1787 = vmatprep.subr.bf16.mxu0 0
        %1788 = vmatpush1.bf16.msra.mxu0 %v1328
        %1789 = vmatprep.subr.bf16.mxu0 0
        %1790 = vmatpush2.bf16.msra.mxu0 %v1373
        %1791 = vmatprep.subr.bf16.mxu0 0
        %1792 = vmatpush2.bf16.msra.mxu0 %v1370
        %1793 = vmatprep.subr.bf16.mxu0 0
        %1794 = vmatpush2.bf16.msra.mxu0 %v1367
        %1795 = vmatprep.subr.bf16.mxu0 0
        %1796 = vmatpush2.bf16.msra.mxu0 %v1364
        %1797 = vmatprep.subr.bf16.mxu0 0
        %1798 = vmatpush2.bf16.msra.mxu0 %v1361
        %1799 = vmatprep.subr.bf16.mxu0 0
        %1800 = vmatpush2.bf16.msra.mxu0 %v1358
        %1801 = vmatprep.subr.bf16.mxu0 0
        %1802 = vmatpush2.bf16.msra.mxu0 %v1355
        %1803 = vmatprep.subr.bf16.mxu0 0
        %1804 = vmatpush2.bf16.msra.mxu0 %v1352
        %1805 = vmatprep.mubr.bf16.mxu0 %v626
        %1806 = vmatmul.mubr.bf16.gmra.mxu0 %v625
        %v1807 = vpop.f32.mrf.mxu0
        %v1808 = vadd.f32 %v842, %v1807
        %v1809 = vpop.f32.mrf.mxu0
        %v1810 = vpop.f32.mrf.mxu0
        %v1811 = vadd.f32 %v842, %v1810
        %v1812 = vpop.f32.mrf.mxu0
        %1813 = vmatprep.mubr.bf16.mxu0 %v632
        %1814 = vmatmul.mubr.bf16.gmra.mxu0 %v631
        %v1815 = vpop.f32.mrf.mxu0
        %v1816 = vadd.f32 %v842, %v1815
        %v1817 = vpop.f32.mrf.mxu0
        %v1818 = vpop.f32.mrf.mxu0
        %v1819 = vadd.f32 %v842, %v1818
        %v1820 = vpop.f32.mrf.mxu0
        %1821 = vdwg.mxu0
        %1822 = vmatprep.subr.bf16.mxu0 0
        %1823 = vmatpush1.bf16.msra.mxu0 %v1397
        %1824 = vmatprep.subr.bf16.mxu0 0
        %1825 = vmatpush1.bf16.msra.mxu0 %v1394
        %1826 = vmatprep.subr.bf16.mxu0 0
        %1827 = vmatpush1.bf16.msra.mxu0 %v1391
        %1828 = vmatprep.subr.bf16.mxu0 0
        %1829 = vmatpush1.bf16.msra.mxu0 %v1388
        %1830 = vmatprep.subr.bf16.mxu0 0
        %1831 = vmatpush1.bf16.msra.mxu0 %v1385
        %1832 = vmatprep.subr.bf16.mxu0 0
        %1833 = vmatpush1.bf16.msra.mxu0 %v1382
        %1834 = vmatprep.subr.bf16.mxu0 0
        %1835 = vmatpush1.bf16.msra.mxu0 %v1379
        %1836 = vmatprep.subr.bf16.mxu0 0
        %1837 = vmatpush1.bf16.msra.mxu0 %v1376
        %1838 = vmatprep.subr.bf16.mxu0 0
        %1839 = vmatpush2.bf16.msra.mxu0 %v1421
        %1840 = vmatprep.subr.bf16.mxu0 0
        %1841 = vmatpush2.bf16.msra.mxu0 %v1418
        %1842 = vmatprep.subr.bf16.mxu0 0
        %1843 = vmatpush2.bf16.msra.mxu0 %v1415
        %1844 = vmatprep.subr.bf16.mxu0 0
        %1845 = vmatpush2.bf16.msra.mxu0 %v1412
        %1846 = vmatprep.subr.bf16.mxu0 0
        %1847 = vmatpush2.bf16.msra.mxu0 %v1409
        %1848 = vmatprep.subr.bf16.mxu0 0
        %1849 = vmatpush2.bf16.msra.mxu0 %v1406
        %1850 = vmatprep.subr.bf16.mxu0 0
        %1851 = vmatpush2.bf16.msra.mxu0 %v1403
        %1852 = vmatprep.subr.bf16.mxu0 0
        %1853 = vmatpush2.bf16.msra.mxu0 %v1400
        %1854 = vmatprep.mubr.bf16.mxu0 %v628
        %1855 = vmatmul.mubr.bf16.gmra.mxu0 %v627
        %v1856 = vpop.f32.mrf.mxu0
        %v1857 = vadd.f32 %v1808, %v1856
        %v1858 = vpop.f32.mrf.mxu0
        %v1859 = vpop.f32.mrf.mxu0
        %v1860 = vadd.f32 %v1811, %v1859
        %v1861 = vpop.f32.mrf.mxu0
        %1862 = vmatprep.mubr.bf16.mxu0 %v634
        %1863 = vmatmul.mubr.bf16.gmra.mxu0 %v633
        %v1864 = vpop.f32.mrf.mxu0
        %v1865 = vadd.f32 %v1816, %v1864
        %v1866 = vpop.f32.mrf.mxu0
        %v1867 = vpop.f32.mrf.mxu0
        %v1868 = vadd.f32 %v1819, %v1867
        %v1869 = vpop.f32.mrf.mxu0
        %1870 = vdwg.mxu0
        %1871 = vmatprep.subr.bf16.mxu0 0
        %1872 = vmatpush1.bf16.msra.mxu0 %v1445
        %1873 = vmatprep.subr.bf16.mxu0 0
        %1874 = vmatpush1.bf16.msra.mxu0 %v1442
        %1875 = vmatprep.subr.bf16.mxu0 0
        %1876 = vmatpush1.bf16.msra.mxu0 %v1439
        %1877 = vmatprep.subr.bf16.mxu0 0
        %1878 = vmatpush1.bf16.msra.mxu0 %v1436
        %1879 = vmatprep.subr.bf16.mxu0 0
        %1880 = vmatpush1.bf16.msra.mxu0 %v1433
        %1881 = vmatprep.subr.bf16.mxu0 0
        %1882 = vmatpush1.bf16.msra.mxu0 %v1430
        %1883 = vmatprep.subr.bf16.mxu0 0
        %1884 = vmatpush1.bf16.msra.mxu0 %v1427
        %1885 = vmatprep.subr.bf16.mxu0 0
        %1886 = vmatpush1.bf16.msra.mxu0 %v1424
        %1887 = vmatprep.subr.bf16.mxu0 0
        %1888 = vmatpush2.bf16.msra.mxu0 %v1469
        %1889 = vmatprep.subr.bf16.mxu0 0
        %1890 = vmatpush2.bf16.msra.mxu0 %v1466
        %1891 = vmatprep.subr.bf16.mxu0 0
        %1892 = vmatpush2.bf16.msra.mxu0 %v1463
        %1893 = vmatprep.subr.bf16.mxu0 0
        %1894 = vmatpush2.bf16.msra.mxu0 %v1460
        %1895 = vmatprep.subr.bf16.mxu0 0
        %1896 = vmatpush2.bf16.msra.mxu0 %v1457
        %1897 = vmatprep.subr.bf16.mxu0 0
        %1898 = vmatpush2.bf16.msra.mxu0 %v1454
        %1899 = vmatprep.subr.bf16.mxu0 0
        %1900 = vmatpush2.bf16.msra.mxu0 %v1451
        %1901 = vmatprep.subr.bf16.mxu0 0
        %1902 = vmatpush2.bf16.msra.mxu0 %v1448
        %1903 = vmatprep.mubr.bf16.mxu0 %v630
        %1904 = vmatmul.mubr.bf16.gmra.mxu0 %v629
        %v1905 = vpop.f32.mrf.mxu0
        %v1906 = vadd.f32 %v1857, %v1905
        %v1907 = vpop.f32.mrf.mxu0
        %v1908 = vpop.f32.mrf.mxu0
        %v1909 = vadd.f32 %v1860, %v1908
        %v1910 = vpop.f32.mrf.mxu0
        %1911 = vmatprep.mubr.bf16.mxu0 %v636
        %1912 = vmatmul.mubr.bf16.gmra.mxu0 %v635
        %v1913 = vpop.f32.mrf.mxu0
        %v1914 = vadd.f32 %v1865, %v1913
        %v1915 = vpop.f32.mrf.mxu0
        %v1916 = vpop.f32.mrf.mxu0
        %v1917 = vadd.f32 %v1868, %v1916
        %v1918 = vpop.f32.mrf.mxu0
        %1919 = vdwg.mxu0
        %v1920 = vtanh.pop %v1755
        %v1921 = vtanh.pop %v1757
        %v1922 = vtanh.pop %v1906
        %v1923 = vtanh.pop %v1759
        %v1924 = vtanh.pop %v1761
        %v1925 = vtanh.pop %v1909
        %v1926 = vtanh.pop %v1765
        %v1927 = vtanh.pop %v1767
        %v1928 = vtanh.pop %v1914
        %v1929 = vtanh.pop %v1769
        %v1930 = vtanh.pop %v1771
        %v1931 = vtanh.pop %v1917
        %v1932 = vpack.c.bf16 %v1923, %v1920
        %v1933 = vpack.c.bf16 %v1924, %v1921
        %v1934 = vpack.c.bf16 %v1925, %v1922
        %v1935 = vpack.c.bf16 %v1929, %v1926
        %v1936 = vpack.c.bf16 %v1930, %v1927
        %v1937 = vpack.c.bf16 %v1931, %v1928
        %v1938 = vld [vmem:[%s5] sm:$0xf]
        %v1939 = vld [vmem:[%s5 + $0x4] sm:$0xf]
        %v1940 = vld [vmem:[%s5 + $0x8] sm:$0xf]
        %v1941 = vld [vmem:[%s5 + $0xc] sm:$0xf]
        %v1942 = vld [vmem:[%s5 + $0x10] sm:$0xf]
        %v1943 = vld [vmem:[%s5 + $0x14] sm:$0xf]
        %v1944 = vld [vmem:[%s5 + $0x18] sm:$0xf]
        %v1945 = vld [vmem:[%s5 + $0x1c] sm:$0xf]
        %v1946 = vld [vmem:[%s5 + $0x20] sm:$0xf]
        %v1947 = vld [vmem:[%s5 + $0x24] sm:$0xf]
        %v1948 = vld [vmem:[%s5 + $0x28] sm:$0xf]
        %v1949 = vld [vmem:[%s5 + $0x2c] sm:$0xf]
        %v1950 = vld [vmem:[%s5 + $0x30] sm:$0xf]
        %v1951 = vld [vmem:[%s5 + $0x34] sm:$0xf]
        %v1952 = vld [vmem:[%s5 + $0x38] sm:$0xf]
        %v1953 = vld [vmem:[%s5 + $0x3c] sm:$0xf]
        %v1954 = vld [vmem:[%s5 + $0x40] sm:$0xf]
        %v1955 = vld [vmem:[%s5 + $0x44] sm:$0xf]
        %v1956 = vld [vmem:[%s5 + $0x48] sm:$0xf]
        %v1957 = vld [vmem:[%s5 + $0x4c] sm:$0xf]
        %v1958 = vld [vmem:[%s5 + $0x50] sm:$0xf]
        %v1959 = vld [vmem:[%s5 + $0x54] sm:$0xf]
        %v1960 = vld [vmem:[%s5 + $0x58] sm:$0xf]
        %v1961 = vld [vmem:[%s5 + $0x5c] sm:$0xf]
        %v1962 = vld [vmem:[%s5 + $0x60] sm:$0xf]
        %v1963 = vld [vmem:[%s5 + $0x64] sm:$0xf]
        %v1964 = vld [vmem:[%s5 + $0x68] sm:$0xf]
        %v1965 = vld [vmem:[%s5 + $0x6c] sm:$0xf]
        %v1966 = vld [vmem:[%s5 + $0x70] sm:$0xf]
        %v1967 = vld [vmem:[%s5 + $0x74] sm:$0xf]
        %v1968 = vld [vmem:[%s5 + $0x78] sm:$0xf]
        %v1969 = vld [vmem:[%s5 + $0x7c] sm:$0xf]
        %v1970 = vld [vmem:[%s5 + $0x80] sm:$0xf]
        %v1971 = vld [vmem:[%s5 + $0x84] sm:$0xf]
        %v1972 = vld [vmem:[%s5 + $0x88] sm:$0xf]
        %v1973 = vld [vmem:[%s5 + $0x8c] sm:$0xf]
        %v1974 = vld [vmem:[%s6] sm:$0x1]
        %v1976 = vlaneseq
        %v1977 = vshrl.u32 %v1976, 7
        %v1978 = vsub.s32 0, %v1977
        %v1979 = vrot.slane %v1974, %v1978
        %v2017 = vunpack.c.l.b16 %v1938
        %v2018 = vunpack.c.l.b16 %v1939
        %v2019 = vunpack.c.l.b16 %v1940
        %v2020 = vunpack.c.l.b16 %v1941
        %v2021 = vunpack.c.l.b16 %v1942
        %v2022 = vunpack.c.l.b16 %v1943
        %v2023 = vunpack.c.l.b16 %v1944
        %v2024 = vunpack.c.l.b16 %v1945
        %v2025 = vunpack.c.l.b16 %v1946
        %v2026 = vunpack.c.l.b16 %v1947
        %v2027 = vunpack.c.l.b16 %v1948
        %v2028 = vunpack.c.l.b16 %v1949
        %v2029 = vunpack.c.l.b16 %v1950
        %v2030 = vunpack.c.l.b16 %v1951
        %v2031 = vunpack.c.l.b16 %v1952
        %v2032 = vunpack.c.l.b16 %v1953
        %v2033 = vunpack.c.l.b16 %v1954
        %v2034 = vunpack.c.l.b16 %v1955
        %v2035 = vunpack.c.l.b16 %v1956
        %v2036 = vunpack.c.l.b16 %v1957
        %v2037 = vunpack.c.l.b16 %v1958
        %v2038 = vunpack.c.l.b16 %v1959
        %v2039 = vunpack.c.l.b16 %v1960
        %v2040 = vunpack.c.l.b16 %v1961
        %v2041 = vunpack.c.l.b16 %v1962
        %v2042 = vunpack.c.l.b16 %v1963
        %v2043 = vunpack.c.l.b16 %v1964
        %v2044 = vunpack.c.l.b16 %v1965
        %v2045 = vunpack.c.l.b16 %v1966
        %v2046 = vunpack.c.l.b16 %v1967
        %v2047 = vunpack.c.l.b16 %v1968
        %v2048 = vunpack.c.l.b16 %v1969
        %v2049 = vunpack.c.l.b16 %v1970
        %v2050 = vunpack.c.l.b16 %v1971
        %v2051 = vunpack.c.l.b16 %v1972
        %v2052 = vunpack.c.l.b16 %v1973
        %v2053 = vpack.c.b16 %v2018, %v2017
        %v2054 = vpack.c.b16 %v2020, %v2019
        %v2055 = vpack.c.b16 %v2022, %v2021
        %v2056 = vpack.c.b16 %v2024, %v2023
        %v2057 = vpack.c.b16 %v2026, %v2025
        %v2058 = vpack.c.b16 %v2028, %v2027
        %v2059 = vpack.c.b16 %v2030, %v2029
        %v2060 = vpack.c.b16 %v2032, %v2031
        %v2061 = vpack.c.b16 %v2034, %v2033
        %v2062 = vpack.c.b16 %v2036, %v2035
        %v2063 = vpack.c.b16 %v2038, %v2037
        %v2064 = vpack.c.b16 %v2040, %v2039
        %v2065 = vpack.c.b16 %v2042, %v2041
        %v2066 = vpack.c.b16 %v2044, %v2043
        %v2067 = vpack.c.b16 %v2046, %v2045
        %v2068 = vpack.c.b16 %v2048, %v2047
        %v2069 = vpack.c.b16 %v2050, %v2049
        %v2070 = vpack.c.b16 %v2052, %v2051
        %vm2089 = vcmask 261120
        %v2091 = vsel %vm2089, %v1934, 0
        %v2094 = vsel %vm2089, %v1937, 0
        %2096 = vmatprep.subr.bf16.mxu0 0
        %2097 = vmatpush1.bf16.msra.mxu0 %v2060
        %2098 = vmatprep.subr.bf16.mxu0 0
        %2099 = vmatpush1.bf16.msra.mxu0 %v2059
        %2100 = vmatprep.subr.bf16.mxu0 0
        %2101 = vmatpush1.bf16.msra.mxu0 %v2058
        %2102 = vmatprep.subr.bf16.mxu0 0
        %2103 = vmatpush1.bf16.msra.mxu0 %v2057
        %2104 = vmatprep.subr.bf16.mxu0 0
        %2105 = vmatpush1.bf16.msra.mxu0 %v2056
        %2106 = vmatprep.subr.bf16.mxu0 0
        %2107 = vmatpush1.bf16.msra.mxu0 %v2055
        %2108 = vmatprep.subr.bf16.mxu0 0
        %2109 = vmatpush1.bf16.msra.mxu0 %v2054
        %2110 = vmatprep.subr.bf16.mxu0 0
        %2111 = vmatpush1.bf16.msra.mxu0 %v2053
        %2112 = vmatprep.subr.bf16.mxu0 0
        %2113 = vmatpush2.bf16.msra.mxu0 %v2068
        %2114 = vmatprep.subr.bf16.mxu0 0
        %2115 = vmatpush2.bf16.msra.mxu0 %v2067
        %2116 = vmatprep.subr.bf16.mxu0 0
        %2117 = vmatpush2.bf16.msra.mxu0 %v2066
        %2118 = vmatprep.subr.bf16.mxu0 0
        %2119 = vmatpush2.bf16.msra.mxu0 %v2065
        %2120 = vmatprep.subr.bf16.mxu0 0
        %2121 = vmatpush2.bf16.msra.mxu0 %v2064
        %2122 = vmatprep.subr.bf16.mxu0 0
        %2123 = vmatpush2.bf16.msra.mxu0 %v2063
        %2124 = vmatprep.subr.bf16.mxu0 0
        %2125 = vmatpush2.bf16.msra.mxu0 %v2062
        %2126 = vmatprep.subr.bf16.mxu0 0
        %2127 = vmatpush2.bf16.msra.mxu0 %v2061
        %2128 = vmatprep.mubr.bf16.mxu0 %v1933
        %2129 = vmatmul.mubr.bf16.gmra.mxu0 %v1932
        %v2130 = vpop.f32.mrf.mxu0
        %v2131 = vadd.f32 %v1979, %v2130
        %v2132 = vpop.f32.mrf.mxu0
        %v2133 = vpop.f32.mrf.mxu0
        %v2134 = vadd.f32 %v1979, %v2133
        %v2135 = vpop.f32.mrf.mxu0
        %2136 = vmatprep.mubr.bf16.mxu0 %v1936
        %2137 = vmatmul.mubr.bf16.gmra.mxu0 %v1935
        %v2138 = vpop.f32.mrf.mxu0
        %v2139 = vadd.f32 %v1979, %v2138
        %v2140 = vpop.f32.mrf.mxu0
        %v2141 = vpop.f32.mrf.mxu0
        %v2142 = vadd.f32 %v1979, %v2141
        %v2143 = vpop.f32.mrf.mxu0
        %2144 = vdwg.mxu0
        %2145 = vmatprep.subr.bf16.mxu0 0
        %2146 = vmatpush1.bf16.msra.mxu0 0
        %2147 = vmatprep.subr.bf16.mxu0 0
        %2148 = vmatpush1.bf16.msra.mxu0 0
        %2149 = vmatprep.subr.bf16.mxu0 0
        %2150 = vmatpush1.bf16.msra.mxu0 0
        %2151 = vmatprep.subr.bf16.mxu0 0
        %2152 = vmatpush1.bf16.msra.mxu0 0
        %2153 = vmatprep.subr.bf16.mxu0 0
        %2154 = vmatpush1.bf16.msra.mxu0 0
        %2155 = vmatprep.subr.bf16.mxu0 0
        %2156 = vmatpush1.bf16.msra.mxu0 0
        %2157 = vmatprep.subr.bf16.mxu0 0
        %2158 = vmatpush1.bf16.msra.mxu0 %v2070
        %2159 = vmatprep.subr.bf16.mxu0 0
        %2160 = vmatpush1.bf16.msra.mxu0 %v2069
        %2161 = vmatprep.subr.bf16.mxu0 0
        %2162 = vmatpush2.bf16.msra.mxu0 0
        %2163 = vmatprep.subr.bf16.mxu0 0
        %2164 = vmatpush2.bf16.msra.mxu0 0
        %2165 = vmatprep.subr.bf16.mxu0 0
        %2166 = vmatpush2.bf16.msra.mxu0 0
        %2167 = vmatprep.subr.bf16.mxu0 0
        %2168 = vmatpush2.bf16.msra.mxu0 0
        %2169 = vmatprep.subr.bf16.mxu0 0
        %2170 = vmatpush2.bf16.msra.mxu0 0
        %2171 = vmatprep.subr.bf16.mxu0 0
        %2172 = vmatpush2.bf16.msra.mxu0 0
        %2173 = vmatprep.subr.bf16.mxu0 0
        %2174 = vmatpush2.bf16.msra.mxu0 0
        %2175 = vmatprep.subr.bf16.mxu0 0
        %2176 = vmatpush2.bf16.msra.mxu0 0
        %2177 = vmatprep.mubr.bf16.mxu0 0
        %2178 = vmatmul.mubr.bf16.gmra.mxu0 %v2091
        %v2179 = vpop.f32.mrf.mxu0
        %v2180 = vadd.f32 %v2131, %v2179
        %v2181 = vpop.f32.mrf.mxu0
        %v2182 = vpop.f32.mrf.mxu0
        %v2183 = vadd.f32 %v2134, %v2182
        %v2184 = vpop.f32.mrf.mxu0
        %2185 = vmatprep.mubr.bf16.mxu0 0
        %2186 = vmatmul.mubr.bf16.gmra.mxu0 %v2094
        %v2187 = vpop.f32.mrf.mxu0
        %v2188 = vadd.f32 %v2139, %v2187
        %v2189 = vpop.f32.mrf.mxu0
        %v2190 = vpop.f32.mrf.mxu0
        %v2191 = vadd.f32 %v2142, %v2190
        %v2192 = vpop.f32.mrf.mxu0
        %2193 = vdwg.mxu0
        %2194 = vst [vmem:[%s272] sm:$0xff] %v2180
        %2195 = vst [vmem:[%s272 + $0x8] sm:$0xff] %v2183
        %2196 = vst [vmem:[%s272 + $0x10] sm:$0xff] %v2188
        %2197 = vst [vmem:[%s272 + $0x18] sm:$0xff] %v2191
        %s2198 = sand.u32 %s181, 1
        %s2199 = scalar_lea.sflag [#allocation3], %s2198
        %s2200 = sand.u32 %s181, 1
        %s2201 = smul.addr %s2200, 32
        %s2202 = scalar_lea.vmem [#allocation2], %s2201
        // Predicated region
        $region49: #{tpu_custom_call.1} parent=47 // pred_check
          %p2203 = pneg %p191
        $region50: #{tpu_custom_call.1} parent=47 // pred_check_branch
          %2205 = sbr.rel (%p2203) target = $region52
        $region51: #{tpu_custom_call.1} parent=47 // pred_region
          %s2206 = smul.u32 4, %s21
          %s2208 = ssub.s32 512, 512
          %2209 = vsyncadd %s2199, %s2208
          %s2210 = smul.addr %s2206, 128
          %s2211 = scalar_lea.hbm %s7, %s2210
          %s2212 = sshll.u32 %s2202, 4
          %s2213 = int_to_ptr.vmem [resolvable:$true] %s2212
          %2218 = dma.vmem_to_hbm [thread:$0]  %s2213, 512, %s2211, %s2199, 128, 128, 8
        $region52: #{tpu_custom_call.1} parent=47 // pred_fallthru
          _
      $region48: #{tpu_custom_call.1} parent=5 // pred_fallthru
        _
      %p2219 = scmp.le.s32.totalorder 2, %s16
      // Predicated region
      $region53: #{tpu_custom_call.1} parent=5 // pred_check
        %p2220 = pneg %p2219
      $region54: #{tpu_custom_call.1} parent=5 // pred_check_branch
        %2222 = sbr.rel (%p2220) target = $region56
      $region55: #{tpu_custom_call.1} parent=5 // pred_region
        %s2223 = ssub.s32 %s16, 2
        // Predicated region
        $region57: #{tpu_custom_call.1} parent=55 // pred_check
          %p2224 = pneg %p197
        $region58: #{tpu_custom_call.1} parent=55 // pred_check_branch
          %2226 = sbr.rel (%p2224) target = $region60
        $region59: #{tpu_custom_call.1} parent=55 // pred_region
          %s2227 = sand.u32 %s182, 1
          %s2228 = scalar_lea.sflag [#allocation3], %s2227
          %s2229 = sand.u32 %s182, 1
          %s2230 = smul.addr %s2229, 32
          %s2231 = scalar_lea.vmem [#allocation2], %s2230
          %2232 = dma.done %s2228, 512
        $region60: #{tpu_custom_call.1} parent=55 // pred_fallthru
          _
      $region56: #{tpu_custom_call.1} parent=5 // pred_fallthru
        _
    $region6: #{tpu_custom_call.1} parent=1 // loop_footer
      %s20 = sadd.s32 1, %s16
    $region7: #{tpu_custom_call.1} parent=1 // loop_footer_branch
      %15 = sbr.rel target = $region3
    $region8: #{tpu_custom_call.1} parent=1 // loop_exit
      _
    %2233 = vsyncpa [#allocation3], 1
    %s2234 = scalar_lea.sflag [#allocation3], 1
    %2235 = vsyncpa %s2234, 1

</llo_original>
